<compile_context>
chip_gen: v5e
topology: v5e:2x2
jax: 0.10.0
libtpu: 0.0.40
codegen_flags: <defaults>
</compile_context>

<pallas_src>
import math

import jax
import jax.numpy as jnp
from jax import lax
from jax.experimental import pallas as pl
from jax.experimental.pallas import tpu as pltpu

HIDDEN = 128          # self.hiddenDim
WINDOW = 20           # self.windowSize  -> GRU "batch" dim is WINDOW - 1 = 19


def gru_stock_kernel(x_ref, wih_ref, whh_ref, bgi_ref, bhhn_ref,
                     wl_ref, bl_ref, y_ref, hseq_ref):
    """Full GRU recurrence (lane B-1 only) + fused Linear(128->1) in one invocation.

    x_ref    : (T, F)    inputs of batch lane B-1 (the only lane reaching out[:, -1])
    wih_ref  : (F, 3H)   W_ih^T   (gate order r, z, n — PyTorch convention)
    whh_ref  : (H, 3H)   W_hh^T
    bgi_ref  : (1, 3H)   b_ih with b_hh[:2H] pre-folded into the r/z slices
    bhhn_ref : (1, H)    b_hh[2H:3H]   (must stay inside the r*(...) term)
    wl_ref   : (H, 1)    hiddenLayer.weight^T
    bl_ref   : (1, 1)    hiddenLayer.bias
    y_ref    : (T, 1)    output  == hiddenLayer(out[:, -1])
    hseq_ref : (T, H)    VMEM scratch holding h_t rows for the final contraction
    """
    T = x_ref.shape[0]
    H = whh_ref.shape[0]

    # (1) Batched input projection for all T steps at once (one MXU pass).
    #     Stays a value -> lives in vregs (~3 vregs at T=8), no scratch traffic.
    #     Matmul precision intentionally left at default so the Mosaic lowering
    #     matches the XLA reference path; pin Precision.HIGHEST for torch-f32 parity.
    gi = (jnp.dot(x_ref[...], wih_ref[...], preferred_element_type=jnp.float32)
          + bgi_ref[...])                                      # (T, 3H)

    # (2) Loop-invariant recurrent weight / bias loaded once.
    w_hh = whh_ref[...]                                        # (H, 3H)
    b_hh_n = bhhn_ref[...]                                     # (1, H)

    # (3) Static unrolled recurrence: static vreg slices of gi, one (1,128)x(128,384)
    #     MXU dot per step; the row store is off the serial critical path.
    h = jnp.zeros((1, H), jnp.float32)                         # h0 = zeros
    for t in range(T):
        gi_t = gi[t:t + 1, :]                                  # (1, 3H) static slice
        gh = jnp.dot(h, w_hh, preferred_element_type=jnp.float32)   # (1, 3H)
        r = jax.nn.sigmoid(gi_t[:, 0:H] + gh[:, 0:H])
        z = jax.nn.sigmoid(gi_t[:, H:2 * H] + gh[:, H:2 * H])
        n = jnp.tanh(gi_t[:, 2 * H:3 * H] + r * (gh[:, 2 * H:3 * H] + b_hh_n))
        h = (1.0 - z) * n + z * h                              # (1, H)
        hseq_ref[pl.ds(t, 1), :] = h                           # static row store

    # (4) Fused Linear(128 -> 1): one small contraction, one (T,1) store at the end.
    y_ref[...] = (jnp.dot(hseq_ref[...], wl_ref[...],
                          preferred_element_type=jnp.float32)
                  + bl_ref[...])


def prepare_params(params):
    """One-time parameter prep (hoisted off the per-call forward path):
    pre-transposed weights, reshaped biases, and b_hh[:2H] folded into b_ih."""
    H = HIDDEN
    b_gi = params["b_ih"] + jnp.concatenate(
        [params["b_hh"][:2 * H], jnp.zeros((H,), jnp.float32)])
    return {
        "wih_t": jnp.asarray(params["w_ih"].T, jnp.float32),   # (F, 3H)
        "whh_t": jnp.asarray(params["w_hh"].T, jnp.float32),   # (H, 3H)
        "b_gi": b_gi.reshape(1, 3 * H),                        # (1, 3H)
        "b_hh_n": params["b_hh"][2 * H:].reshape(1, H),        # (1, H)
        "wl_t": jnp.asarray(params["w_l"].T, jnp.float32),     # (H, 1)
        "b_l": params["b_l"].reshape(1, 1),                    # (1, 1)
    }


@jax.jit
def gru_stock_forward(x, prep):
    """x: (T, B, F) float32 == PyTorch (seq_len, batch=windowSize-1, features).

    Returns (T, 1) float32 == hiddenLayer(gru(x, h0)[0][:, -1]).
    """
    T, B, F = x.shape
    H = HIDDEN

    # out[:, -1] depends only on GRU batch lane B-1 (lanes are independent and
    # h0 == 0), so rows 0..B-2 are dead work — drop them before the kernel.
    x_last = x[:, B - 1, :]                                    # (T, F)

    # Note: single pallas_call, no grid — one TensorCore; fine at this size
    # (total resident data << VMEM on v5e/v6e/v7x).  Add a "parallel" grid axis
    # only if T / hidden size / live lanes ever grow substantially.
    return pl.pallas_call(
        gru_stock_kernel,
        out_shape=jax.ShapeDtypeStruct((T, 1), jnp.float32),
        scratch_shapes=[pltpu.VMEM((T, H), jnp.float32)],
    )(x_last, prep["wih_t"], prep["whh_t"], prep["b_gi"], prep["b_hh_n"],
      prep["wl_t"], prep["b_l"])


def gru_stock_reference(x, params):
    """Pure-JAX reference matching torch.nn.GRU + Linear semantics (full batch)."""
    H = HIDDEN
    w_ih, w_hh = params["w_ih"], params["w_hh"]
    b_ih, b_hh = params["b_ih"], params["b_hh"]

    def cell(h, x_t):
        gi = x_t @ w_ih.T + b_ih
        gh = h @ w_hh.T + b_hh
        r = jax.nn.sigmoid(gi[:, :H] + gh[:, :H])
        z = jax.nn.sigmoid(gi[:, H:2 * H] + gh[:, H:2 * H])
        n = jnp.tanh(gi[:, 2 * H:] + r * gh[:, 2 * H:])
        h_new = (1.0 - z) * n + z * h
        return h_new, h_new

    h0 = jnp.zeros((x.shape[1], H), jnp.float32)
    _, outs = lax.scan(cell, h0, x)                 # (T, B, H)
    last = outs[:, -1, :]                           # (T, H)  == out[:, -1]
    return last @ params["w_l"].T + params["b_l"]   # (T, 1)


def init_params(key, input_size):
    """Deterministic init with PyTorch-style uniform(-1/sqrt(H), 1/sqrt(H))."""
    H = HIDDEN
    bound = 1.0 / math.sqrt(H)
    ks = jax.random.split(key, 6)
    u = lambda k, shape: jax.random.uniform(
        k, shape, dtype=jnp.float32, minval=-bound, maxval=bound)
    return {
        "w_ih": u(ks[0], (3 * H, input_size)),   # gru.weight_ih_l0
        "w_hh": u(ks[1], (3 * H, H)),            # gru.weight_hh_l0
        "b_ih": u(ks[2], (3 * H,)),              # gru.bias_ih_l0
        "b_hh": u(ks[3], (3 * H,)),              # gru.bias_hh_l0
        "w_l": u(ks[4], (1, H)),                 # hiddenLayer.weight
        "b_l": u(ks[5], (1,)),                   # hiddenLayer.bias
    }


if __name__ == "__main__":
    # inputSize = len(minmax)+len(robust)+len(origin)+len(std) -> pick 6 features.
    # TODO(synk): sliceWindow / dataProcessing / learn (pandas, sklearn scalers,
    # training loop, plotting) are preprocessing/training, not part of forward.
    T, B, F = 8, WINDOW - 1, 6     # T windows, GRU "batch" = windowSize-1 = 19
    key = jax.random.PRNGKey(0)
    kx, kp = jax.random.split(key)
    x = jax.random.normal(kx, (T, B, F), dtype=jnp.float32)
    params = init_params(kp, F)
    prep = prepare_params(params)          # one-time prep, not on the forward path

    y = jax.block_until_ready(gru_stock_forward(x, prep))
    y_ref = jax.block_until_ready(gru_stock_reference(x, params))

    assert y.shape == (T, 1), y.shape
    assert jnp.allclose(y, y_ref, rtol=1e-5, atol=1e-5), (
        f"mismatch: max abs err {jnp.max(jnp.abs(y - y_ref))}")

    print("KERNEL_OK")
</pallas_src>

<mosaic_0001>
module attributes {stable_mosaic.version = 11 : i64} {
  func.func @gru_stock_kernel(%arg0: memref<8x6xf32, #tpu.memory_space<vmem>>, %arg1: memref<6x384xf32, #tpu.memory_space<vmem>>, %arg2: memref<128x384xf32, #tpu.memory_space<vmem>>, %arg3: memref<1x384xf32, #tpu.memory_space<vmem>>, %arg4: memref<1x128xf32, #tpu.memory_space<vmem>>, %arg5: memref<128x1xf32, #tpu.memory_space<vmem>>, %arg6: memref<1x1xf32, #tpu.memory_space<vmem>>, %arg7: memref<8x1xf32, #tpu.memory_space<vmem>>, %arg8: memref<8x128xf32, #tpu.memory_space<vmem>>) attributes {dimension_semantics = [], scalar_prefetch = 0 : i64, scratch_operands = 1 : i64, tpu.core_type = #tpu.core_type<tc>} {
    %c0 = arith.constant 0 : index
    %c0_0 = arith.constant 0 : index
    %0 = vector.load %arg0[%c0, %c0_0] : memref<8x6xf32, #tpu.memory_space<vmem>>, vector<8x6xf32>
    %c0_1 = arith.constant 0 : index
    %c0_2 = arith.constant 0 : index
    %1 = vector.load %arg1[%c0_1, %c0_2] : memref<6x384xf32, #tpu.memory_space<vmem>>, vector<6x384xf32>
    %cst = arith.constant dense<0.000000e+00> : vector<8x384xf32>
    %2 = tpu.matmul %0, %1, %cst {dimension_numbers = #tpu.dot_dimension_numbers<[1], [0], [0], [1], [0, 0, 1, 1], [], []>} : vector<8x6xf32>, vector<6x384xf32>, vector<8x384xf32> -> vector<8x384xf32>
    %c0_3 = arith.constant 0 : index
    %c0_4 = arith.constant 0 : index
    %3 = vector.load %arg3[%c0_3, %c0_4] : memref<1x384xf32, #tpu.memory_space<vmem>>, vector<1x384xf32>
    %4 = vector.broadcast %3 : vector<1x384xf32> to vector<8x384xf32>
    %5 = arith.addf %2, %4 : vector<8x384xf32>
    %c0_5 = arith.constant 0 : index
    %c0_6 = arith.constant 0 : index
    %6 = vector.load %arg2[%c0_5, %c0_6] : memref<128x384xf32, #tpu.memory_space<vmem>>, vector<128x384xf32>
    %c0_7 = arith.constant 0 : index
    %c0_8 = arith.constant 0 : index
    %7 = vector.load %arg4[%c0_7, %c0_8] : memref<1x128xf32, #tpu.memory_space<vmem>>, vector<1x128xf32>
    %cst_9 = arith.constant 0.000000e+00 : f32
    %8 = vector.broadcast %cst_9 : f32 to vector<1x128xf32>
    %9 = vector.extract_strided_slice %5 {offsets = [0, 0], sizes = [1, 384], strides = [1, 1]} : vector<8x384xf32> to vector<1x384xf32>
    %cst_10 = arith.constant dense<0.000000e+00> : vector<1x384xf32>
    %10 = tpu.matmul %8, %6, %cst_10 {dimension_numbers = #tpu.dot_dimension_numbers<[1], [0], [0], [1], [0, 0, 1, 1], [], []>} : vector<1x128xf32>, vector<128x384xf32>, vector<1x384xf32> -> vector<1x384xf32>
    %11 = vector.extract_strided_slice %9 {offsets = [0, 0], sizes = [1, 128], strides = [1, 1]} : vector<1x384xf32> to vector<1x128xf32>
    %12 = vector.extract_strided_slice %10 {offsets = [0, 0], sizes = [1, 128], strides = [1, 1]} : vector<1x384xf32> to vector<1x128xf32>
    %13 = arith.addf %11, %12 : vector<1x128xf32>
    %14 = arith.negf %13 : vector<1x128xf32>
    %15 = math.exp %14 : vector<1x128xf32>
    %cst_11 = arith.constant 1.000000e+00 : f32
    %16 = vector.broadcast %cst_11 : f32 to vector<1x128xf32>
    %17 = arith.addf %16, %15 : vector<1x128xf32>
    %18 = arith.divf %16, %17 : vector<1x128xf32>
    %19 = vector.extract_strided_slice %9 {offsets = [0, 128], sizes = [1, 128], strides = [1, 1]} : vector<1x384xf32> to vector<1x128xf32>
    %20 = vector.extract_strided_slice %10 {offsets = [0, 128], sizes = [1, 128], strides = [1, 1]} : vector<1x384xf32> to vector<1x128xf32>
    %21 = arith.addf %19, %20 : vector<1x128xf32>
    %22 = arith.negf %21 : vector<1x128xf32>
    %23 = math.exp %22 : vector<1x128xf32>
    %cst_12 = arith.constant 1.000000e+00 : f32
    %24 = vector.broadcast %cst_12 : f32 to vector<1x128xf32>
    %25 = arith.addf %24, %23 : vector<1x128xf32>
    %26 = arith.divf %24, %25 : vector<1x128xf32>
    %27 = vector.extract_strided_slice %9 {offsets = [0, 256], sizes = [1, 128], strides = [1, 1]} : vector<1x384xf32> to vector<1x128xf32>
    %28 = vector.extract_strided_slice %10 {offsets = [0, 256], sizes = [1, 128], strides = [1, 1]} : vector<1x384xf32> to vector<1x128xf32>
    %29 = arith.addf %28, %7 : vector<1x128xf32>
    %30 = arith.mulf %18, %29 : vector<1x128xf32>
    %31 = arith.addf %27, %30 : vector<1x128xf32>
    %32 = math.tanh %31 : vector<1x128xf32>
    %cst_13 = arith.constant 1.000000e+00 : f32
    %33 = vector.broadcast %cst_13 : f32 to vector<1x128xf32>
    %34 = arith.subf %33, %26 : vector<1x128xf32>
    %35 = arith.mulf %34, %32 : vector<1x128xf32>
    %36 = arith.mulf %26, %8 : vector<1x128xf32>
    %37 = arith.addf %35, %36 : vector<1x128xf32>
    %c0_14 = arith.constant 0 : index
    %c0_15 = arith.constant 0 : index
    %38 = vector.load %arg8[%c0_14, %c0_15] : memref<8x128xf32, #tpu.memory_space<vmem>>, vector<1x128xf32>
    tpu.vector_store %arg8[%c0_14, %c0_15], %37 {strides = array<i32>} : memref<8x128xf32, #tpu.memory_space<vmem>>, vector<1x128xf32>,
    %39 = vector.extract_strided_slice %5 {offsets = [1, 0], sizes = [1, 384], strides = [1, 1]} : vector<8x384xf32> to vector<1x384xf32>
    %cst_16 = arith.constant dense<0.000000e+00> : vector<1x384xf32>
    %40 = tpu.matmul %37, %6, %cst_16 {dimension_numbers = #tpu.dot_dimension_numbers<[1], [0], [0], [1], [0, 0, 1, 1], [], []>} : vector<1x128xf32>, vector<128x384xf32>, vector<1x384xf32> -> vector<1x384xf32>
    %41 = vector.extract_strided_slice %39 {offsets = [0, 0], sizes = [1, 128], strides = [1, 1]} : vector<1x384xf32> to vector<1x128xf32>
    %42 = vector.extract_strided_slice %40 {offsets = [0, 0], sizes = [1, 128], strides = [1, 1]} : vector<1x384xf32> to vector<1x128xf32>
    %43 = arith.addf %41, %42 : vector<1x128xf32>
    %44 = arith.negf %43 : vector<1x128xf32>
    %45 = math.exp %44 : vector<1x128xf32>
    %cst_17 = arith.constant 1.000000e+00 : f32
    %46 = vector.broadcast %cst_17 : f32 to vector<1x128xf32>
    %47 = arith.addf %46, %45 : vector<1x128xf32>
    %48 = arith.divf %46, %47 : vector<1x128xf32>
    %49 = vector.extract_strided_slice %39 {offsets = [0, 128], sizes = [1, 128], strides = [1, 1]} : vector<1x384xf32> to vector<1x128xf32>
    %50 = vector.extract_strided_slice %40 {offsets = [0, 128], sizes = [1, 128], strides = [1, 1]} : vector<1x384xf32> to vector<1x128xf32>
    %51 = arith.addf %49, %50 : vector<1x128xf32>
    %52 = arith.negf %51 : vector<1x128xf32>
    %53 = math.exp %52 : vector<1x128xf32>
    %cst_18 = arith.constant 1.000000e+00 : f32
    %54 = vector.broadcast %cst_18 : f32 to vector<1x128xf32>
    %55 = arith.addf %54, %53 : vector<1x128xf32>
    %56 = arith.divf %54, %55 : vector<1x128xf32>
    %57 = vector.extract_strided_slice %39 {offsets = [0, 256], sizes = [1, 128], strides = [1, 1]} : vector<1x384xf32> to vector<1x128xf32>
    %58 = vector.extract_strided_slice %40 {offsets = [0, 256], sizes = [1, 128], strides = [1, 1]} : vector<1x384xf32> to vector<1x128xf32>
    %59 = arith.addf %58, %7 : vector<1x128xf32>
    %60 = arith.mulf %48, %59 : vector<1x128xf32>
    %61 = arith.addf %57, %60 : vector<1x128xf32>
    %62 = math.tanh %61 : vector<1x128xf32>
    %cst_19 = arith.constant 1.000000e+00 : f32
    %63 = vector.broadcast %cst_19 : f32 to vector<1x128xf32>
    %64 = arith.subf %63, %56 : vector<1x128xf32>
    %65 = arith.mulf %64, %62 : vector<1x128xf32>
    %66 = arith.mulf %56, %37 : vector<1x128xf32>
    %67 = arith.addf %65, %66 : vector<1x128xf32>
    %c1 = arith.constant 1 : index
    %c0_20 = arith.constant 0 : index
    %68 = vector.load %arg8[%c1, %c0_20] : memref<8x128xf32, #tpu.memory_space<vmem>>, vector<1x128xf32>
    tpu.vector_store %arg8[%c1, %c0_20], %67 {strides = array<i32>} : memref<8x128xf32, #tpu.memory_space<vmem>>, vector<1x128xf32>,
    %69 = vector.extract_strided_slice %5 {offsets = [2, 0], sizes = [1, 384], strides = [1, 1]} : vector<8x384xf32> to vector<1x384xf32>
    %cst_21 = arith.constant dense<0.000000e+00> : vector<1x384xf32>
    %70 = tpu.matmul %67, %6, %cst_21 {dimension_numbers = #tpu.dot_dimension_numbers<[1], [0], [0], [1], [0, 0, 1, 1], [], []>} : vector<1x128xf32>, vector<128x384xf32>, vector<1x384xf32> -> vector<1x384xf32>
    %71 = vector.extract_strided_slice %69 {offsets = [0, 0], sizes = [1, 128], strides = [1, 1]} : vector<1x384xf32> to vector<1x128xf32>
    %72 = vector.extract_strided_slice %70 {offsets = [0, 0], sizes = [1, 128], strides = [1, 1]} : vector<1x384xf32> to vector<1x128xf32>
    %73 = arith.addf %71, %72 : vector<1x128xf32>
    %74 = arith.negf %73 : vector<1x128xf32>
    %75 = math.exp %74 : vector<1x128xf32>
    %cst_22 = arith.constant 1.000000e+00 : f32
    %76 = vector.broadcast %cst_22 : f32 to vector<1x128xf32>
    %77 = arith.addf %76, %75 : vector<1x128xf32>
    %78 = arith.divf %76, %77 : vector<1x128xf32>
    %79 = vector.extract_strided_slice %69 {offsets = [0, 128], sizes = [1, 128], strides = [1, 1]} : vector<1x384xf32> to vector<1x128xf32>
    %80 = vector.extract_strided_slice %70 {offsets = [0, 128], sizes = [1, 128], strides = [1, 1]} : vector<1x384xf32> to vector<1x128xf32>
    %81 = arith.addf %79, %80 : vector<1x128xf32>
    %82 = arith.negf %81 : vector<1x128xf32>
    %83 = math.exp %82 : vector<1x128xf32>
    %cst_23 = arith.constant 1.000000e+00 : f32
    %84 = vector.broadcast %cst_23 : f32 to vector<1x128xf32>
    %85 = arith.addf %84, %83 : vector<1x128xf32>
    %86 = arith.divf %84, %85 : vector<1x128xf32>
    %87 = vector.extract_strided_slice %69 {offsets = [0, 256], sizes = [1, 128], strides = [1, 1]} : vector<1x384xf32> to vector<1x128xf32>
    %88 = vector.extract_strided_slice %70 {offsets = [0, 256], sizes = [1, 128], strides = [1, 1]} : vector<1x384xf32> to vector<1x128xf32>
    %89 = arith.addf %88, %7 : vector<1x128xf32>
    %90 = arith.mulf %78, %89 : vector<1x128xf32>
    %91 = arith.addf %87, %90 : vector<1x128xf32>
    %92 = math.tanh %91 : vector<1x128xf32>
    %cst_24 = arith.constant 1.000000e+00 : f32
    %93 = vector.broadcast %cst_24 : f32 to vector<1x128xf32>
    %94 = arith.subf %93, %86 : vector<1x128xf32>
    %95 = arith.mulf %94, %92 : vector<1x128xf32>
    %96 = arith.mulf %86, %67 : vector<1x128xf32>
    %97 = arith.addf %95, %96 : vector<1x128xf32>
    %c2 = arith.constant 2 : index
    %c0_25 = arith.constant 0 : index
    %98 = vector.load %arg8[%c2, %c0_25] : memref<8x128xf32, #tpu.memory_space<vmem>>, vector<1x128xf32>
    tpu.vector_store %arg8[%c2, %c0_25], %97 {strides = array<i32>} : memref<8x128xf32, #tpu.memory_space<vmem>>, vector<1x128xf32>,
    %99 = vector.extract_strided_slice %5 {offsets = [3, 0], sizes = [1, 384], strides = [1, 1]} : vector<8x384xf32> to vector<1x384xf32>
    %cst_26 = arith.constant dense<0.000000e+00> : vector<1x384xf32>
    %100 = tpu.matmul %97, %6, %cst_26 {dimension_numbers = #tpu.dot_dimension_numbers<[1], [0], [0], [1], [0, 0, 1, 1], [], []>} : vector<1x128xf32>, vector<128x384xf32>, vector<1x384xf32> -> vector<1x384xf32>
    %101 = vector.extract_strided_slice %99 {offsets = [0, 0], sizes = [1, 128], strides = [1, 1]} : vector<1x384xf32> to vector<1x128xf32>
    %102 = vector.extract_strided_slice %100 {offsets = [0, 0], sizes = [1, 128], strides = [1, 1]} : vector<1x384xf32> to vector<1x128xf32>
    %103 = arith.addf %101, %102 : vector<1x128xf32>
    %104 = arith.negf %103 : vector<1x128xf32>
    %105 = math.exp %104 : vector<1x128xf32>
    %cst_27 = arith.constant 1.000000e+00 : f32
    %106 = vector.broadcast %cst_27 : f32 to vector<1x128xf32>
    %107 = arith.addf %106, %105 : vector<1x128xf32>
    %108 = arith.divf %106, %107 : vector<1x128xf32>
    %109 = vector.extract_strided_slice %99 {offsets = [0, 128], sizes = [1, 128], strides = [1, 1]} : vector<1x384xf32> to vector<1x128xf32>
    %110 = vector.extract_strided_slice %100 {offsets = [0, 128], sizes = [1, 128], strides = [1, 1]} : vector<1x384xf32> to vector<1x128xf32>
    %111 = arith.addf %109, %110 : vector<1x128xf32>
    %112 = arith.negf %111 : vector<1x128xf32>
    %113 = math.exp %112 : vector<1x128xf32>
    %cst_28 = arith.constant 1.000000e+00 : f32
    %114 = vector.broadcast %cst_28 : f32 to vector<1x128xf32>
    %115 = arith.addf %114, %113 : vector<1x128xf32>
    %116 = arith.divf %114, %115 : vector<1x128xf32>
    %117 = vector.extract_strided_slice %99 {offsets = [0, 256], sizes = [1, 128], strides = [1, 1]} : vector<1x384xf32> to vector<1x128xf32>
    %118 = vector.extract_strided_slice %100 {offsets = [0, 256], sizes = [1, 128], strides = [1, 1]} : vector<1x384xf32> to vector<1x128xf32>
    %119 = arith.addf %118, %7 : vector<1x128xf32>
    %120 = arith.mulf %108, %119 : vector<1x128xf32>
    %121 = arith.addf %117, %120 : vector<1x128xf32>
    %122 = math.tanh %121 : vector<1x128xf32>
    %cst_29 = arith.constant 1.000000e+00 : f32
    %123 = vector.broadcast %cst_29 : f32 to vector<1x128xf32>
    %124 = arith.subf %123, %116 : vector<1x128xf32>
    %125 = arith.mulf %124, %122 : vector<1x128xf32>
    %126 = arith.mulf %116, %97 : vector<1x128xf32>
    %127 = arith.addf %125, %126 : vector<1x128xf32>
    %c3 = arith.constant 3 : index
    %c0_30 = arith.constant 0 : index
    %128 = vector.load %arg8[%c3, %c0_30] : memref<8x128xf32, #tpu.memory_space<vmem>>, vector<1x128xf32>
    tpu.vector_store %arg8[%c3, %c0_30], %127 {strides = array<i32>} : memref<8x128xf32, #tpu.memory_space<vmem>>, vector<1x128xf32>,
    %129 = vector.extract_strided_slice %5 {offsets = [4, 0], sizes = [1, 384], strides = [1, 1]} : vector<8x384xf32> to vector<1x384xf32>
    %cst_31 = arith.constant dense<0.000000e+00> : vector<1x384xf32>
    %130 = tpu.matmul %127, %6, %cst_31 {dimension_numbers = #tpu.dot_dimension_numbers<[1], [0], [0], [1], [0, 0, 1, 1], [], []>} : vector<1x128xf32>, vector<128x384xf32>, vector<1x384xf32> -> vector<1x384xf32>
    %131 = vector.extract_strided_slice %129 {offsets = [0, 0], sizes = [1, 128], strides = [1, 1]} : vector<1x384xf32> to vector<1x128xf32>
    %132 = vector.extract_strided_slice %130 {offsets = [0, 0], sizes = [1, 128], strides = [1, 1]} : vector<1x384xf32> to vector<1x128xf32>
    %133 = arith.addf %131, %132 : vector<1x128xf32>
    %134 = arith.negf %133 : vector<1x128xf32>
    %135 = math.exp %134 : vector<1x128xf32>
    %cst_32 = arith.constant 1.000000e+00 : f32
    %136 = vector.broadcast %cst_32 : f32 to vector<1x128xf32>
    %137 = arith.addf %136, %135 : vector<1x128xf32>
    %138 = arith.divf %136, %137 : vector<1x128xf32>
    %139 = vector.extract_strided_slice %129 {offsets = [0, 128], sizes = [1, 128], strides = [1, 1]} : vector<1x384xf32> to vector<1x128xf32>
    %140 = vector.extract_strided_slice %130 {offsets = [0, 128], sizes = [1, 128], strides = [1, 1]} : vector<1x384xf32> to vector<1x128xf32>
    %141 = arith.addf %139, %140 : vector<1x128xf32>
    %142 = arith.negf %141 : vector<1x128xf32>
    %143 = math.exp %142 : vector<1x128xf32>
    %cst_33 = arith.constant 1.000000e+00 : f32
    %144 = vector.broadcast %cst_33 : f32 to vector<1x128xf32>
    %145 = arith.addf %144, %143 : vector<1x128xf32>
    %146 = arith.divf %144, %145 : vector<1x128xf32>
    %147 = vector.extract_strided_slice %129 {offsets = [0, 256], sizes = [1, 128], strides = [1, 1]} : vector<1x384xf32> to vector<1x128xf32>
    %148 = vector.extract_strided_slice %130 {offsets = [0, 256], sizes = [1, 128], strides = [1, 1]} : vector<1x384xf32> to vector<1x128xf32>
    %149 = arith.addf %148, %7 : vector<1x128xf32>
    %150 = arith.mulf %138, %149 : vector<1x128xf32>
    %151 = arith.addf %147, %150 : vector<1x128xf32>
    %152 = math.tanh %151 : vector<1x128xf32>
    %cst_34 = arith.constant 1.000000e+00 : f32
    %153 = vector.broadcast %cst_34 : f32 to vector<1x128xf32>
    %154 = arith.subf %153, %146 : vector<1x128xf32>
    %155 = arith.mulf %154, %152 : vector<1x128xf32>
    %156 = arith.mulf %146, %127 : vector<1x128xf32>
    %157 = arith.addf %155, %156 : vector<1x128xf32>
    %c4 = arith.constant 4 : index
    %c0_35 = arith.constant 0 : index
    %158 = vector.load %arg8[%c4, %c0_35] : memref<8x128xf32, #tpu.memory_space<vmem>>, vector<1x128xf32>
    tpu.vector_store %arg8[%c4, %c0_35], %157 {strides = array<i32>} : memref<8x128xf32, #tpu.memory_space<vmem>>, vector<1x128xf32>,
    %159 = vector.extract_strided_slice %5 {offsets = [5, 0], sizes = [1, 384], strides = [1, 1]} : vector<8x384xf32> to vector<1x384xf32>
    %cst_36 = arith.constant dense<0.000000e+00> : vector<1x384xf32>
    %160 = tpu.matmul %157, %6, %cst_36 {dimension_numbers = #tpu.dot_dimension_numbers<[1], [0], [0], [1], [0, 0, 1, 1], [], []>} : vector<1x128xf32>, vector<128x384xf32>, vector<1x384xf32> -> vector<1x384xf32>
    %161 = vector.extract_strided_slice %159 {offsets = [0, 0], sizes = [1, 128], strides = [1, 1]} : vector<1x384xf32> to vector<1x128xf32>
    %162 = vector.extract_strided_slice %160 {offsets = [0, 0], sizes = [1, 128], strides = [1, 1]} : vector<1x384xf32> to vector<1x128xf32>
    %163 = arith.addf %161, %162 : vector<1x128xf32>
    %164 = arith.negf %163 : vector<1x128xf32>
    %165 = math.exp %164 : vector<1x128xf32>
    %cst_37 = arith.constant 1.000000e+00 : f32
    %166 = vector.broadcast %cst_37 : f32 to vector<1x128xf32>
    %167 = arith.addf %166, %165 : vector<1x128xf32>
    %168 = arith.divf %166, %167 : vector<1x128xf32>
    %169 = vector.extract_strided_slice %159 {offsets = [0, 128], sizes = [1, 128], strides = [1, 1]} : vector<1x384xf32> to vector<1x128xf32>
    %170 = vector.extract_strided_slice %160 {offsets = [0, 128], sizes = [1, 128], strides = [1, 1]} : vector<1x384xf32> to vector<1x128xf32>
    %171 = arith.addf %169, %170 : vector<1x128xf32>
    %172 = arith.negf %171 : vector<1x128xf32>
    %173 = math.exp %172 : vector<1x128xf32>
    %cst_38 = arith.constant 1.000000e+00 : f32
    %174 = vector.broadcast %cst_38 : f32 to vector<1x128xf32>
    %175 = arith.addf %174, %173 : vector<1x128xf32>
    %176 = arith.divf %174, %175 : vector<1x128xf32>
    %177 = vector.extract_strided_slice %159 {offsets = [0, 256], sizes = [1, 128], strides = [1, 1]} : vector<1x384xf32> to vector<1x128xf32>
    %178 = vector.extract_strided_slice %160 {offsets = [0, 256], sizes = [1, 128], strides = [1, 1]} : vector<1x384xf32> to vector<1x128xf32>
    %179 = arith.addf %178, %7 : vector<1x128xf32>
    %180 = arith.mulf %168, %179 : vector<1x128xf32>
    %181 = arith.addf %177, %180 : vector<1x128xf32>
    %182 = math.tanh %181 : vector<1x128xf32>
    %cst_39 = arith.constant 1.000000e+00 : f32
    %183 = vector.broadcast %cst_39 : f32 to vector<1x128xf32>
    %184 = arith.subf %183, %176 : vector<1x128xf32>
    %185 = arith.mulf %184, %182 : vector<1x128xf32>
    %186 = arith.mulf %176, %157 : vector<1x128xf32>
    %187 = arith.addf %185, %186 : vector<1x128xf32>
    %c5 = arith.constant 5 : index
    %c0_40 = arith.constant 0 : index
    %188 = vector.load %arg8[%c5, %c0_40] : memref<8x128xf32, #tpu.memory_space<vmem>>, vector<1x128xf32>
    tpu.vector_store %arg8[%c5, %c0_40], %187 {strides = array<i32>} : memref<8x128xf32, #tpu.memory_space<vmem>>, vector<1x128xf32>,
    %189 = vector.extract_strided_slice %5 {offsets = [6, 0], sizes = [1, 384], strides = [1, 1]} : vector<8x384xf32> to vector<1x384xf32>
    %cst_41 = arith.constant dense<0.000000e+00> : vector<1x384xf32>
    %190 = tpu.matmul %187, %6, %cst_41 {dimension_numbers = #tpu.dot_dimension_numbers<[1], [0], [0], [1], [0, 0, 1, 1], [], []>} : vector<1x128xf32>, vector<128x384xf32>, vector<1x384xf32> -> vector<1x384xf32>
    %191 = vector.extract_strided_slice %189 {offsets = [0, 0], sizes = [1, 128], strides = [1, 1]} : vector<1x384xf32> to vector<1x128xf32>
    %192 = vector.extract_strided_slice %190 {offsets = [0, 0], sizes = [1, 128], strides = [1, 1]} : vector<1x384xf32> to vector<1x128xf32>
    %193 = arith.addf %191, %192 : vector<1x128xf32>
    %194 = arith.negf %193 : vector<1x128xf32>
    %195 = math.exp %194 : vector<1x128xf32>
    %cst_42 = arith.constant 1.000000e+00 : f32
    %196 = vector.broadcast %cst_42 : f32 to vector<1x128xf32>
    %197 = arith.addf %196, %195 : vector<1x128xf32>
    %198 = arith.divf %196, %197 : vector<1x128xf32>
    %199 = vector.extract_strided_slice %189 {offsets = [0, 128], sizes = [1, 128], strides = [1, 1]} : vector<1x384xf32> to vector<1x128xf32>
    %200 = vector.extract_strided_slice %190 {offsets = [0, 128], sizes = [1, 128], strides = [1, 1]} : vector<1x384xf32> to vector<1x128xf32>
    %201 = arith.addf %199, %200 : vector<1x128xf32>
    %202 = arith.negf %201 : vector<1x128xf32>
    %203 = math.exp %202 : vector<1x128xf32>
    %cst_43 = arith.constant 1.000000e+00 : f32
    %204 = vector.broadcast %cst_43 : f32 to vector<1x128xf32>
    %205 = arith.addf %204, %203 : vector<1x128xf32>
    %206 = arith.divf %204, %205 : vector<1x128xf32>
    %207 = vector.extract_strided_slice %189 {offsets = [0, 256], sizes = [1, 128], strides = [1, 1]} : vector<1x384xf32> to vector<1x128xf32>
    %208 = vector.extract_strided_slice %190 {offsets = [0, 256], sizes = [1, 128], strides = [1, 1]} : vector<1x384xf32> to vector<1x128xf32>
    %209 = arith.addf %208, %7 : vector<1x128xf32>
    %210 = arith.mulf %198, %209 : vector<1x128xf32>
    %211 = arith.addf %207, %210 : vector<1x128xf32>
    %212 = math.tanh %211 : vector<1x128xf32>
    %cst_44 = arith.constant 1.000000e+00 : f32
    %213 = vector.broadcast %cst_44 : f32 to vector<1x128xf32>
    %214 = arith.subf %213, %206 : vector<1x128xf32>
    %215 = arith.mulf %214, %212 : vector<1x128xf32>
    %216 = arith.mulf %206, %187 : vector<1x128xf32>
    %217 = arith.addf %215, %216 : vector<1x128xf32>
    %c6 = arith.constant 6 : index
    %c0_45 = arith.constant 0 : index
    %218 = vector.load %arg8[%c6, %c0_45] : memref<8x128xf32, #tpu.memory_space<vmem>>, vector<1x128xf32>
    tpu.vector_store %arg8[%c6, %c0_45], %217 {strides = array<i32>} : memref<8x128xf32, #tpu.memory_space<vmem>>, vector<1x128xf32>,
    %219 = vector.extract_strided_slice %5 {offsets = [7, 0], sizes = [1, 384], strides = [1, 1]} : vector<8x384xf32> to vector<1x384xf32>
    %cst_46 = arith.constant dense<0.000000e+00> : vector<1x384xf32>
    %220 = tpu.matmul %217, %6, %cst_46 {dimension_numbers = #tpu.dot_dimension_numbers<[1], [0], [0], [1], [0, 0, 1, 1], [], []>} : vector<1x128xf32>, vector<128x384xf32>, vector<1x384xf32> -> vector<1x384xf32>
    %221 = vector.extract_strided_slice %219 {offsets = [0, 0], sizes = [1, 128], strides = [1, 1]} : vector<1x384xf32> to vector<1x128xf32>
    %222 = vector.extract_strided_slice %220 {offsets = [0, 0], sizes = [1, 128], strides = [1, 1]} : vector<1x384xf32> to vector<1x128xf32>
    %223 = arith.addf %221, %222 : vector<1x128xf32>
    %224 = arith.negf %223 : vector<1x128xf32>
    %225 = math.exp %224 : vector<1x128xf32>
    %cst_47 = arith.constant 1.000000e+00 : f32
    %226 = vector.broadcast %cst_47 : f32 to vector<1x128xf32>
    %227 = arith.addf %226, %225 : vector<1x128xf32>
    %228 = arith.divf %226, %227 : vector<1x128xf32>
    %229 = vector.extract_strided_slice %219 {offsets = [0, 128], sizes = [1, 128], strides = [1, 1]} : vector<1x384xf32> to vector<1x128xf32>
    %230 = vector.extract_strided_slice %220 {offsets = [0, 128], sizes = [1, 128], strides = [1, 1]} : vector<1x384xf32> to vector<1x128xf32>
    %231 = arith.addf %229, %230 : vector<1x128xf32>
    %232 = arith.negf %231 : vector<1x128xf32>
    %233 = math.exp %232 : vector<1x128xf32>
    %cst_48 = arith.constant 1.000000e+00 : f32
    %234 = vector.broadcast %cst_48 : f32 to vector<1x128xf32>
    %235 = arith.addf %234, %233 : vector<1x128xf32>
    %236 = arith.divf %234, %235 : vector<1x128xf32>
    %237 = vector.extract_strided_slice %219 {offsets = [0, 256], sizes = [1, 128], strides = [1, 1]} : vector<1x384xf32> to vector<1x128xf32>
    %238 = vector.extract_strided_slice %220 {offsets = [0, 256], sizes = [1, 128], strides = [1, 1]} : vector<1x384xf32> to vector<1x128xf32>
    %239 = arith.addf %238, %7 : vector<1x128xf32>
    %240 = arith.mulf %228, %239 : vector<1x128xf32>
    %241 = arith.addf %237, %240 : vector<1x128xf32>
    %242 = math.tanh %241 : vector<1x128xf32>
    %cst_49 = arith.constant 1.000000e+00 : f32
    %243 = vector.broadcast %cst_49 : f32 to vector<1x128xf32>
    %244 = arith.subf %243, %236 : vector<1x128xf32>
    %245 = arith.mulf %244, %242 : vector<1x128xf32>
    %246 = arith.mulf %236, %217 : vector<1x128xf32>
    %247 = arith.addf %245, %246 : vector<1x128xf32>
    %c7 = arith.constant 7 : index
    %c0_50 = arith.constant 0 : index
    %248 = vector.load %arg8[%c7, %c0_50] : memref<8x128xf32, #tpu.memory_space<vmem>>, vector<1x128xf32>
    tpu.vector_store %arg8[%c7, %c0_50], %247 {strides = array<i32>} : memref<8x128xf32, #tpu.memory_space<vmem>>, vector<1x128xf32>,
    %c0_51 = arith.constant 0 : index
    %c0_52 = arith.constant 0 : index
    %249 = vector.load %arg8[%c0_51, %c0_52] : memref<8x128xf32, #tpu.memory_space<vmem>>, vector<8x128xf32>
    %c0_53 = arith.constant 0 : index
    %c0_54 = arith.constant 0 : index
    %250 = vector.load %arg5[%c0_53, %c0_54] : memref<128x1xf32, #tpu.memory_space<vmem>>, vector<128x1xf32>
    %cst_55 = arith.constant dense<0.000000e+00> : vector<8x1xf32>
    %251 = tpu.matmul %249, %250, %cst_55 {dimension_numbers = #tpu.dot_dimension_numbers<[1], [0], [0], [1], [0, 0, 1, 1], [], []>} : vector<8x128xf32>, vector<128x1xf32>, vector<8x1xf32> -> vector<8x1xf32>
    %c0_56 = arith.constant 0 : index
    %c0_57 = arith.constant 0 : index
    %252 = vector.load %arg6[%c0_56, %c0_57] : memref<1x1xf32, #tpu.memory_space<vmem>>, vector<1x1xf32>
    %253 = vector.broadcast %252 : vector<1x1xf32> to vector<8x1xf32>
    %254 = arith.addf %251, %253 : vector<8x1xf32>
    %c0_58 = arith.constant 0 : index
    %c0_59 = arith.constant 0 : index
    %255 = vector.load %arg7[%c0_58, %c0_59] : memref<8x1xf32, #tpu.memory_space<vmem>>, vector<8x1xf32>
    tpu.vector_store %arg7[%c0_58, %c0_59], %254 {strides = array<i32>} : memref<8x1xf32, #tpu.memory_space<vmem>>, vector<8x1xf32>,
    return
  }
}

</mosaic_0001>

<llo_original>
// kernel: gru_stock_forward.1
$region0: #{gru_stock_forward.1}
  #allocation0 [shape = 'u32[]', space=smem, size = 0x4, offset = 0x4, fixed_abs, tag = 'smem constant byte address 0x4 - core index']
  #allocation1 [shape = 'u32[72,128]{1,0:T(1,128)}', space=vmem, size = 0x9000, scoped, tag = 'internal scratch']
  #allocation2 [shape = 'f32[8,128]{1,0:T(8,128)}', space=vmem, size = 0x1000, scoped, tag = 'scratch operand']
  #allocation3 [shape = 'f32[1,1]{1,0:T(1,128)S(1)}', space=vmem, size = 0x200, scoped, tag = 'scoped memory for gru_stock_forward.1']
  %s0 = inlined_call_operand.vmem [shape: f32[8,6], index: 0, kind: input, shape index: {}]
  %s1 = inlined_call_operand.vmem [shape: f32[6,384], index: 1, kind: input, shape index: {}]
  %s2 = inlined_call_operand.hbm [shape: f32[128,384], index: 2, kind: input, shape index: {}]
  %s3 = inlined_call_operand.vmem [shape: f32[1,384], index: 3, kind: input, shape index: {}]
  %s4 = inlined_call_operand.vmem [shape: f32[1,128], index: 4, kind: input, shape index: {}]
  %s5 = inlined_call_operand.vmem [shape: f32[128,1], index: 5, kind: input, shape index: {}]
  %s6 = inlined_call_operand.<no memory space> [shape: f32[1,1], index: 6, kind: input, shape index: {}]
  %s7 = inlined_call_operand.vmem [shape: f32[8,1], index: 7, kind: output, shape index: {}]
  %s8 = sld [smem:[#allocation0]]
  $region42: #{gru_stock_forward.1} parent=0
    _
  %s10 = ssub.s32 1, %s8
  %s11 = scalar_select 0, %s10, %s8
  %v12 = vstv %s6
  %13 = vst [vmem:[#allocation3] sm:$0x1] %v12
  $region1: #{gru_stock_forward.1} parent=0
    #allocation4 [shape = 'u8[196608]{0}', space=vmem, size = 0x30000, scoped, tag = 'input window, operand 2, single buffered']
    #allocation5 [shape = 's32[1]{0}', space=sflag, size = 0x4, scoped, tag = 'scoped memory for gru_stock_forward.1']
    %14 = vsyncpa [#allocation5], 0
    // Predicated region
    $region2: #{gru_stock_forward.1} parent=1 // pred_check
      _
    $region3: #{gru_stock_forward.1} parent=1 // pred_check_branch
      %16 = sbr.rel (0) target = $region5
    $region4: #{gru_stock_forward.1} parent=1 // pred_region
      _
    $region5: #{gru_stock_forward.1} parent=1 // pred_fallthru
      _
    // Predicated region
    $region6: #{gru_stock_forward.1} parent=1 // pred_check
      _
    $region7: #{gru_stock_forward.1} parent=1 // pred_check_branch
      %18 = sbr.rel (0) target = $region9
    $region8: #{gru_stock_forward.1} parent=1 // pred_region
      _
    $region9: #{gru_stock_forward.1} parent=1 // pred_fallthru
      _
    // Predicated region
    $region10: #{gru_stock_forward.1} parent=1 // pred_check
      _
    $region11: #{gru_stock_forward.1} parent=1 // pred_check_branch
      %20 = sbr.rel (0) target = $region13
    $region12: #{gru_stock_forward.1} parent=1 // pred_region
      %22 = vsyncadd [#allocation5], 0
      %s23 = sshll.u32 %s2, 4
      %s24 = int_to_ptr.hbm [resolvable:$true] %s23
      %s25 = sshll.u32 [#allocation4], 4
      %s26 = int_to_ptr.vmem [resolvable:$true] %s25
      %31 = dma.hbm_to_vmem [thread:$0]  %s24, 6144, %s26, [#allocation5], 384, 384, 24
    $region13: #{gru_stock_forward.1} parent=1 // pred_fallthru
      _
    // Predicated region
    $region14: #{gru_stock_forward.1} parent=1 // pred_check
      _
    $region15: #{gru_stock_forward.1} parent=1 // pred_check_branch
      %33 = sbr.rel (0) target = $region17
    $region16: #{gru_stock_forward.1} parent=1 // pred_region
      _
    $region17: #{gru_stock_forward.1} parent=1 // pred_fallthru
      _
    // Predicated region
    $region18: #{gru_stock_forward.1} parent=1 // pred_check
      _
    $region19: #{gru_stock_forward.1} parent=1 // pred_check_branch
      %35 = sbr.rel (0) target = $region21
    $region20: #{gru_stock_forward.1} parent=1 // pred_region
      _
    $region21: #{gru_stock_forward.1} parent=1 // pred_fallthru
      _
    // Predicated region
    $region22: #{gru_stock_forward.1} parent=1 // pred_check
      _
    $region23: #{gru_stock_forward.1} parent=1 // pred_check_branch
      %37 = sbr.rel (0) target = $region25
    $region24: #{gru_stock_forward.1} parent=1 // pred_region
      _
    $region25: #{gru_stock_forward.1} parent=1 // pred_fallthru
      _
    // Predicated region
    $region26: #{gru_stock_forward.1} parent=1 // pred_check
      _
    $region27: #{gru_stock_forward.1} parent=1 // pred_check_branch
      %39 = sbr.rel (0) target = $region29
    $region28: #{gru_stock_forward.1} parent=1 // pred_region
      _
    $region29: #{gru_stock_forward.1} parent=1 // pred_fallthru
      _
    // Predicated region
    $region30: #{gru_stock_forward.1} parent=1 // pred_check
      _
    $region31: #{gru_stock_forward.1} parent=1 // pred_check_branch
      %41 = sbr.rel (0) target = $region33
    $region32: #{gru_stock_forward.1} parent=1 // pred_region
      %43 = dma.done [#allocation5], 6144
    $region33: #{gru_stock_forward.1} parent=1 // pred_fallthru
      _
    %v44 = vld [vmem:[%s0] sm:$0xff]
    %v45 = vld [vmem:[%s1] sm:$0x3f]
    %v46 = vld [vmem:[%s1 + $0x8] sm:$0x3f]
    %v47 = vld [vmem:[%s1 + $0x10] sm:$0x3f]
    %v48 = vld [vmem:[%s3] sm:$0x7]
    %v50 = vperm.slane %v48, 0
    %v51 = vperm.slane %v48, 1
    %v52 = vperm.slane %v48, 2
    %vm56 = vcmask 48128
    %v58 = vsel %vm56, %v44, 0
    %vm60 = vcmask 1045504
    %v62 = vsel %vm60, %v45, 0
    %v65 = vsel %vm60, %v46, 0
    %v68 = vsel %vm60, %v47, 0
    %70 = vmatpush.msra.mxu0 0.0
    %71 = vmatpush.msra.mxu0 0.0
    %72 = vmatpush.msra.mxu0 0.0
    %73 = vmatpush.msra.mxu0 0.0
    %74 = vmatpush.msra.mxu0 0.0
    %75 = vmatpush.msra.mxu0 0.0
    %76 = vmatpush.msra.mxu0 0.0
    %77 = vmatpush.msra.mxu0 0.0
    %78 = vmatpush.msra.mxu0 0.0
    %79 = vmatpush.msra.mxu0 0.0
    %80 = vmatpush.msra.mxu0 0.0
    %81 = vmatpush.msra.mxu0 0.0
    %82 = vmatpush.msra.mxu0 0.0
    %83 = vmatpush.msra.mxu0 0.0
    %84 = vmatpush.msra.mxu0 0.0
    %85 = vmatpush.msra.mxu0 %v62
    %86 = vmatmul.f32.gmra.mxu0 %v58
    %v87 = vpop.f32.mrf.mxu0
    %v88 = vadd.f32 %v50, %v87
    %89 = vdwg.mxu0
    %90 = vmatpush.msra.mxu0 0.0
    %91 = vmatpush.msra.mxu0 0.0
    %92 = vmatpush.msra.mxu0 0.0
    %93 = vmatpush.msra.mxu0 0.0
    %94 = vmatpush.msra.mxu0 0.0
    %95 = vmatpush.msra.mxu0 0.0
    %96 = vmatpush.msra.mxu0 0.0
    %97 = vmatpush.msra.mxu0 0.0
    %98 = vmatpush.msra.mxu0 0.0
    %99 = vmatpush.msra.mxu0 0.0
    %100 = vmatpush.msra.mxu0 0.0
    %101 = vmatpush.msra.mxu0 0.0
    %102 = vmatpush.msra.mxu0 0.0
    %103 = vmatpush.msra.mxu0 0.0
    %104 = vmatpush.msra.mxu0 0.0
    %105 = vmatpush.msra.mxu0 %v65
    %106 = vmatmul.f32.gmra.mxu0 %v58
    %v107 = vpop.f32.mrf.mxu0
    %v108 = vadd.f32 %v51, %v107
    %109 = vdwg.mxu0
    %110 = vmatpush.msra.mxu0 0.0
    %111 = vmatpush.msra.mxu0 0.0
    %112 = vmatpush.msra.mxu0 0.0
    %113 = vmatpush.msra.mxu0 0.0
    %114 = vmatpush.msra.mxu0 0.0
    %115 = vmatpush.msra.mxu0 0.0
    %116 = vmatpush.msra.mxu0 0.0
    %117 = vmatpush.msra.mxu0 0.0
    %118 = vmatpush.msra.mxu0 0.0
    %119 = vmatpush.msra.mxu0 0.0
    %120 = vmatpush.msra.mxu0 0.0
    %121 = vmatpush.msra.mxu0 0.0
    %122 = vmatpush.msra.mxu0 0.0
    %123 = vmatpush.msra.mxu0 0.0
    %124 = vmatpush.msra.mxu0 0.0
    %125 = vmatpush.msra.mxu0 %v68
    %126 = vmatmul.f32.gmra.mxu0 %v58
    %v127 = vpop.f32.mrf.mxu0
    %v128 = vadd.f32 %v52, %v127
    %129 = vdwg.mxu0
    %v130 = vld [vmem:[#allocation4] sm:$0xff]
    %v131 = vld [vmem:[#allocation4 + $0x8] sm:$0xff]
    %v132 = vld [vmem:[#allocation4 + $0x10] sm:$0xff]
    %v133 = vld [vmem:[#allocation4 + $0x18] sm:$0xff]
    %v134 = vld [vmem:[#allocation4 + $0x20] sm:$0xff]
    %v135 = vld [vmem:[#allocation4 + $0x28] sm:$0xff]
    %v136 = vld [vmem:[#allocation4 + $0x30] sm:$0xff]
    %v137 = vld [vmem:[#allocation4 + $0x38] sm:$0xff]
    %v138 = vld [vmem:[#allocation4 + $0x40] sm:$0xff]
    %v139 = vld [vmem:[#allocation4 + $0x48] sm:$0xff]
    %v140 = vld [vmem:[#allocation4 + $0x50] sm:$0xff]
    %v141 = vld [vmem:[#allocation4 + $0x58] sm:$0xff]
    %v142 = vld [vmem:[#allocation4 + $0x60] sm:$0xff]
    %v143 = vld [vmem:[#allocation4 + $0x68] sm:$0xff]
    %v144 = vld [vmem:[#allocation4 + $0x70] sm:$0xff]
    %v145 = vld [vmem:[#allocation4 + $0x78] sm:$0xff]
    %v146 = vld [vmem:[#allocation4 + $0x80] sm:$0xff]
    %v147 = vld [vmem:[#allocation4 + $0x88] sm:$0xff]
    %v148 = vld [vmem:[#allocation4 + $0x90] sm:$0xff]
    %v149 = vld [vmem:[#allocation4 + $0x98] sm:$0xff]
    %v150 = vld [vmem:[#allocation4 + $0xa0] sm:$0xff]
    %v151 = vld [vmem:[#allocation4 + $0xa8] sm:$0xff]
    %v152 = vld [vmem:[#allocation4 + $0xb0] sm:$0xff]
    %v153 = vld [vmem:[#allocation4 + $0xb8] sm:$0xff]
    %v154 = vld [vmem:[#allocation4 + $0xc0] sm:$0xff]
    %v155 = vld [vmem:[#allocation4 + $0xc8] sm:$0xff]
    %v156 = vld [vmem:[#allocation4 + $0xd0] sm:$0xff]
    %v157 = vld [vmem:[#allocation4 + $0xd8] sm:$0xff]
    %v158 = vld [vmem:[#allocation4 + $0xe0] sm:$0xff]
    %v159 = vld [vmem:[#allocation4 + $0xe8] sm:$0xff]
    %v160 = vld [vmem:[#allocation4 + $0xf0] sm:$0xff]
    %v161 = vld [vmem:[#allocation4 + $0xf8] sm:$0xff]
    %v162 = vld [vmem:[#allocation4 + $0x100] sm:$0xff]
    %v163 = vld [vmem:[#allocation4 + $0x108] sm:$0xff]
    %v164 = vld [vmem:[#allocation4 + $0x110] sm:$0xff]
    %v165 = vld [vmem:[#allocation4 + $0x118] sm:$0xff]
    %v166 = vld [vmem:[#allocation4 + $0x120] sm:$0xff]
    %v167 = vld [vmem:[#allocation4 + $0x128] sm:$0xff]
    %v168 = vld [vmem:[#allocation4 + $0x130] sm:$0xff]
    %v169 = vld [vmem:[#allocation4 + $0x138] sm:$0xff]
    %v170 = vld [vmem:[#allocation4 + $0x140] sm:$0xff]
    %v171 = vld [vmem:[#allocation4 + $0x148] sm:$0xff]
    %v172 = vld [vmem:[#allocation4 + $0x150] sm:$0xff]
    %v173 = vld [vmem:[#allocation4 + $0x158] sm:$0xff]
    %v174 = vld [vmem:[#allocation4 + $0x160] sm:$0xff]
    %v175 = vld [vmem:[#allocation4 + $0x168] sm:$0xff]
    %v176 = vld [vmem:[#allocation4 + $0x170] sm:$0xff]
    %v177 = vld [vmem:[#allocation4 + $0x178] sm:$0xff]
    %v178 = vld [vmem:[%s4] sm:$0x1]
    %179 = vmatpush.msra.mxu0 %v175
    %180 = vmatpush.msra.mxu0 %v172
    %181 = vmatpush.msra.mxu0 %v169
    %182 = vmatpush.msra.mxu0 %v166
    %183 = vmatpush.msra.mxu0 %v163
    %184 = vmatpush.msra.mxu0 %v160
    %185 = vmatpush.msra.mxu0 %v157
    %186 = vmatpush.msra.mxu0 %v154
    %187 = vmatpush.msra.mxu0 %v151
    %188 = vmatpush.msra.mxu0 %v148
    %189 = vmatpush.msra.mxu0 %v145
    %190 = vmatpush.msra.mxu0 %v142
    %191 = vmatpush.msra.mxu0 %v139
    %192 = vmatpush.msra.mxu0 %v136
    %193 = vmatpush.msra.mxu0 %v133
    %194 = vmatpush.msra.mxu0 %v130
    %195 = vmatmul.f32.gmra.mxu0 0.0
    %v196 = vpop.f32.mrf.mxu0
    %v197 = vadd.f32 0.0, %v196
    %198 = vdwg.mxu0
    %199 = vmatpush.msra.mxu0 %v176
    %200 = vmatpush.msra.mxu0 %v173
    %201 = vmatpush.msra.mxu0 %v170
    %202 = vmatpush.msra.mxu0 %v167
    %203 = vmatpush.msra.mxu0 %v164
    %204 = vmatpush.msra.mxu0 %v161
    %205 = vmatpush.msra.mxu0 %v158
    %206 = vmatpush.msra.mxu0 %v155
    %207 = vmatpush.msra.mxu0 %v152
    %208 = vmatpush.msra.mxu0 %v149
    %209 = vmatpush.msra.mxu0 %v146
    %210 = vmatpush.msra.mxu0 %v143
    %211 = vmatpush.msra.mxu0 %v140
    %212 = vmatpush.msra.mxu0 %v137
    %213 = vmatpush.msra.mxu0 %v134
    %214 = vmatpush.msra.mxu0 %v131
    %215 = vmatmul.f32.gmra.mxu0 0.0
    %v216 = vpop.f32.mrf.mxu0
    %v217 = vadd.f32 0.0, %v216
    %218 = vdwg.mxu0
    %219 = vmatpush.msra.mxu0 %v177
    %220 = vmatpush.msra.mxu0 %v174
    %221 = vmatpush.msra.mxu0 %v171
    %222 = vmatpush.msra.mxu0 %v168
    %223 = vmatpush.msra.mxu0 %v165
    %224 = vmatpush.msra.mxu0 %v162
    %225 = vmatpush.msra.mxu0 %v159
    %226 = vmatpush.msra.mxu0 %v156
    %227 = vmatpush.msra.mxu0 %v153
    %228 = vmatpush.msra.mxu0 %v150
    %229 = vmatpush.msra.mxu0 %v147
    %230 = vmatpush.msra.mxu0 %v144
    %231 = vmatpush.msra.mxu0 %v141
    %232 = vmatpush.msra.mxu0 %v138
    %233 = vmatpush.msra.mxu0 %v135
    %234 = vmatpush.msra.mxu0 %v132
    %235 = vmatmul.f32.gmra.mxu0 0.0
    %v236 = vpop.f32.mrf.mxu0
    %v237 = vadd.f32 0.0, %v236
    %238 = vdwg.mxu0
    %v239 = vadd.f32 %v88, %v197
    %v240 = vxor.u32 %v239, 2147483648
    %v241 = vmul.f32 %v240, 1.442695
    %v242 = vpow.pop %v241
    %v243 = vadd.f32 %v242, 1.0
    %v244 = vrcp.pop %v243
    %v245 = vmul.f32 %v243, %v244
    %v246 = vsub.f32 1.0, %v245
    %v247 = vmul.f32 %v244, %v246
    %v248 = vadd.f32 %v244, %v247
    %vm249 = vweird.f32 %v243
    %vm250 = vweird.f32 %v244
    %vm251 = vmor %vm249, %vm250
    %v252 = vsel %vm251, %v244, %v248
    %v253 = vand.u32 2147483647, %v243
    %vm254 = vcmp.eq.f32.partialorder %v253, 8.507059e+37
    %v255 = vand.u32 %v243, 2147483648
    %v256 = vor.u32 1.1754944e-38, %v255
    %v257 = vsel %vm254, %v256, %v252
    %v258 = vmul.f32 1.0, %v257
    %v259 = vadd.f32 %v108, %v217
    %v260 = vxor.u32 %v259, 2147483648
    %v261 = vmul.f32 %v260, 1.442695
    %v262 = vpow.pop %v261
    %v263 = vadd.f32 %v262, 1.0
    %v264 = vrcp.pop %v263
    %v265 = vmul.f32 %v263, %v264
    %v266 = vsub.f32 1.0, %v265
    %v267 = vmul.f32 %v264, %v266
    %v268 = vadd.f32 %v264, %v267
    %vm269 = vweird.f32 %v263
    %vm270 = vweird.f32 %v264
    %vm271 = vmor %vm269, %vm270
    %v272 = vsel %vm271, %v264, %v268
    %v273 = vand.u32 2147483647, %v263
    %vm274 = vcmp.eq.f32.partialorder %v273, 8.507059e+37
    %v275 = vand.u32 %v263, 2147483648
    %v276 = vor.u32 1.1754944e-38, %v275
    %v277 = vsel %vm274, %v276, %v272
    %v278 = vmul.f32 1.0, %v277
    %v279 = vadd.f32 %v237, %v178
    %v280 = vmul.f32 %v258, %v279
    %v281 = vadd.f32 %v128, %v280
    %v282 = vtanh.pop %v281
    %v283 = vsub.f32 1.0, %v278
    %v284 = vmul.f32 %v283, %v282
    %v285 = vmul.f32 %v278, 0.0
    %v286 = vadd.f32 %v284, %v285
    %287 = vst [vmem:[#allocation2] sm:$0x1] %v286
    %288 = vmatpush.msra.mxu0 %v175
    %289 = vmatpush.msra.mxu0 %v172
    %290 = vmatpush.msra.mxu0 %v169
    %291 = vmatpush.msra.mxu0 %v166
    %292 = vmatpush.msra.mxu0 %v163
    %293 = vmatpush.msra.mxu0 %v160
    %294 = vmatpush.msra.mxu0 %v157
    %295 = vmatpush.msra.mxu0 %v154
    %296 = vmatpush.msra.mxu0 %v151
    %297 = vmatpush.msra.mxu0 %v148
    %298 = vmatpush.msra.mxu0 %v145
    %299 = vmatpush.msra.mxu0 %v142
    %300 = vmatpush.msra.mxu0 %v139
    %301 = vmatpush.msra.mxu0 %v136
    %302 = vmatpush.msra.mxu0 %v133
    %303 = vmatpush.msra.mxu0 %v130
    %304 = vmatmul.f32.gmra.mxu0 %v286
    %v305 = vpop.f32.mrf.mxu0
    %v306 = vadd.f32 0.0, %v305
    %307 = vdwg.mxu0
    %308 = vmatpush.msra.mxu0 %v176
    %309 = vmatpush.msra.mxu0 %v173
    %310 = vmatpush.msra.mxu0 %v170
    %311 = vmatpush.msra.mxu0 %v167
    %312 = vmatpush.msra.mxu0 %v164
    %313 = vmatpush.msra.mxu0 %v161
    %314 = vmatpush.msra.mxu0 %v158
    %315 = vmatpush.msra.mxu0 %v155
    %316 = vmatpush.msra.mxu0 %v152
    %317 = vmatpush.msra.mxu0 %v149
    %318 = vmatpush.msra.mxu0 %v146
    %319 = vmatpush.msra.mxu0 %v143
    %320 = vmatpush.msra.mxu0 %v140
    %321 = vmatpush.msra.mxu0 %v137
    %322 = vmatpush.msra.mxu0 %v134
    %323 = vmatpush.msra.mxu0 %v131
    %324 = vmatmul.f32.gmra.mxu0 %v286
    %v325 = vpop.f32.mrf.mxu0
    %v326 = vadd.f32 0.0, %v325
    %327 = vdwg.mxu0
    %328 = vmatpush.msra.mxu0 %v177
    %329 = vmatpush.msra.mxu0 %v174
    %330 = vmatpush.msra.mxu0 %v171
    %331 = vmatpush.msra.mxu0 %v168
    %332 = vmatpush.msra.mxu0 %v165
    %333 = vmatpush.msra.mxu0 %v162
    %334 = vmatpush.msra.mxu0 %v159
    %335 = vmatpush.msra.mxu0 %v156
    %336 = vmatpush.msra.mxu0 %v153
    %337 = vmatpush.msra.mxu0 %v150
    %338 = vmatpush.msra.mxu0 %v147
    %339 = vmatpush.msra.mxu0 %v144
    %340 = vmatpush.msra.mxu0 %v141
    %341 = vmatpush.msra.mxu0 %v138
    %342 = vmatpush.msra.mxu0 %v135
    %343 = vmatpush.msra.mxu0 %v132
    %344 = vmatmul.f32.gmra.mxu0 %v286
    %v345 = vpop.f32.mrf.mxu0
    %v346 = vadd.f32 0.0, %v345
    %347 = vdwg.mxu0
    %v349 = vrot.slane %v306, 7
    %v351 = vadd.f32 %v88, %v349
    %v352 = vxor.u32 %v351, 2147483648
    %v353 = vmul.f32 %v352, 1.442695
    %v354 = vpow.pop %v353
    %v355 = vadd.f32 %v354, 1.0
    %v356 = vrcp.pop %v355
    %v357 = vmul.f32 %v355, %v356
    %v358 = vsub.f32 1.0, %v357
    %v359 = vmul.f32 %v356, %v358
    %v360 = vadd.f32 %v356, %v359
    %vm361 = vweird.f32 %v355
    %vm362 = vweird.f32 %v356
    %vm363 = vmor %vm361, %vm362
    %v364 = vsel %vm363, %v356, %v360
    %v365 = vand.u32 2147483647, %v355
    %vm366 = vcmp.eq.f32.partialorder %v365, 8.507059e+37
    %v367 = vand.u32 %v355, 2147483648
    %v368 = vor.u32 1.1754944e-38, %v367
    %v369 = vsel %vm366, %v368, %v364
    %v370 = vmul.f32 1.0, %v369
    %v372 = vrot.slane %v326, 7
    %v374 = vadd.f32 %v108, %v372
    %v375 = vxor.u32 %v374, 2147483648
    %v376 = vmul.f32 %v375, 1.442695
    %v377 = vpow.pop %v376
    %v378 = vadd.f32 %v377, 1.0
    %v379 = vrcp.pop %v378
    %v380 = vmul.f32 %v378, %v379
    %v381 = vsub.f32 1.0, %v380
    %v382 = vmul.f32 %v379, %v381
    %v383 = vadd.f32 %v379, %v382
    %vm384 = vweird.f32 %v378
    %vm385 = vweird.f32 %v379
    %vm386 = vmor %vm384, %vm385
    %v387 = vsel %vm386, %v379, %v383
    %v388 = vand.u32 2147483647, %v378
    %vm389 = vcmp.eq.f32.partialorder %v388, 8.507059e+37
    %v390 = vand.u32 %v378, 2147483648
    %v391 = vor.u32 1.1754944e-38, %v390
    %v392 = vsel %vm389, %v391, %v387
    %v393 = vmul.f32 1.0, %v392
    %v394 = vadd.f32 %v346, %v178
    %v396 = vrot.slane %v394, 7
    %v398 = vmul.f32 %v370, %v396
    %v399 = vadd.f32 %v128, %v398
    %v400 = vtanh.pop %v399
    %v401 = vsub.f32 1.0, %v393
    %v402 = vmul.f32 %v401, %v400
    %v404 = vrot.slane %v286, 7
    %v406 = vmul.f32 %v393, %v404
    %v407 = vadd.f32 %v402, %v406
    %408 = vst [vmem:[#allocation2] sm:$0x2] %v407
    %v410 = vrot.slane %v407, 1
    %412 = vmatpush.msra.mxu0 %v175
    %413 = vmatpush.msra.mxu0 %v172
    %414 = vmatpush.msra.mxu0 %v169
    %415 = vmatpush.msra.mxu0 %v166
    %416 = vmatpush.msra.mxu0 %v163
    %417 = vmatpush.msra.mxu0 %v160
    %418 = vmatpush.msra.mxu0 %v157
    %419 = vmatpush.msra.mxu0 %v154
    %420 = vmatpush.msra.mxu0 %v151
    %421 = vmatpush.msra.mxu0 %v148
    %422 = vmatpush.msra.mxu0 %v145
    %423 = vmatpush.msra.mxu0 %v142
    %424 = vmatpush.msra.mxu0 %v139
    %425 = vmatpush.msra.mxu0 %v136
    %426 = vmatpush.msra.mxu0 %v133
    %427 = vmatpush.msra.mxu0 %v130
    %428 = vmatmul.f32.gmra.mxu0 %v410
    %v429 = vpop.f32.mrf.mxu0
    %v430 = vadd.f32 0.0, %v429
    %431 = vdwg.mxu0
    %432 = vmatpush.msra.mxu0 %v176
    %433 = vmatpush.msra.mxu0 %v173
    %434 = vmatpush.msra.mxu0 %v170
    %435 = vmatpush.msra.mxu0 %v167
    %436 = vmatpush.msra.mxu0 %v164
    %437 = vmatpush.msra.mxu0 %v161
    %438 = vmatpush.msra.mxu0 %v158
    %439 = vmatpush.msra.mxu0 %v155
    %440 = vmatpush.msra.mxu0 %v152
    %441 = vmatpush.msra.mxu0 %v149
    %442 = vmatpush.msra.mxu0 %v146
    %443 = vmatpush.msra.mxu0 %v143
    %444 = vmatpush.msra.mxu0 %v140
    %445 = vmatpush.msra.mxu0 %v137
    %446 = vmatpush.msra.mxu0 %v134
    %447 = vmatpush.msra.mxu0 %v131
    %448 = vmatmul.f32.gmra.mxu0 %v410
    %v449 = vpop.f32.mrf.mxu0
    %v450 = vadd.f32 0.0, %v449
    %451 = vdwg.mxu0
    %452 = vmatpush.msra.mxu0 %v177
    %453 = vmatpush.msra.mxu0 %v174
    %454 = vmatpush.msra.mxu0 %v171
    %455 = vmatpush.msra.mxu0 %v168
    %456 = vmatpush.msra.mxu0 %v165
    %457 = vmatpush.msra.mxu0 %v162
    %458 = vmatpush.msra.mxu0 %v159
    %459 = vmatpush.msra.mxu0 %v156
    %460 = vmatpush.msra.mxu0 %v153
    %461 = vmatpush.msra.mxu0 %v150
    %462 = vmatpush.msra.mxu0 %v147
    %463 = vmatpush.msra.mxu0 %v144
    %464 = vmatpush.msra.mxu0 %v141
    %465 = vmatpush.msra.mxu0 %v138
    %466 = vmatpush.msra.mxu0 %v135
    %467 = vmatpush.msra.mxu0 %v132
    %468 = vmatmul.f32.gmra.mxu0 %v410
    %v469 = vpop.f32.mrf.mxu0
    %v470 = vadd.f32 0.0, %v469
    %471 = vdwg.mxu0
    %v473 = vrot.slane %v430, 6
    %v475 = vadd.f32 %v88, %v473
    %v476 = vxor.u32 %v475, 2147483648
    %v477 = vmul.f32 %v476, 1.442695
    %v478 = vpow.pop %v477
    %v479 = vadd.f32 %v478, 1.0
    %v480 = vrcp.pop %v479
    %v481 = vmul.f32 %v479, %v480
    %v482 = vsub.f32 1.0, %v481
    %v483 = vmul.f32 %v480, %v482
    %v484 = vadd.f32 %v480, %v483
    %vm485 = vweird.f32 %v479
    %vm486 = vweird.f32 %v480
    %vm487 = vmor %vm485, %vm486
    %v488 = vsel %vm487, %v480, %v484
    %v489 = vand.u32 2147483647, %v479
    %vm490 = vcmp.eq.f32.partialorder %v489, 8.507059e+37
    %v491 = vand.u32 %v479, 2147483648
    %v492 = vor.u32 1.1754944e-38, %v491
    %v493 = vsel %vm490, %v492, %v488
    %v494 = vmul.f32 1.0, %v493
    %v496 = vrot.slane %v450, 6
    %v498 = vadd.f32 %v108, %v496
    %v499 = vxor.u32 %v498, 2147483648
    %v500 = vmul.f32 %v499, 1.442695
    %v501 = vpow.pop %v500
    %v502 = vadd.f32 %v501, 1.0
    %v503 = vrcp.pop %v502
    %v504 = vmul.f32 %v502, %v503
    %v505 = vsub.f32 1.0, %v504
    %v506 = vmul.f32 %v503, %v505
    %v507 = vadd.f32 %v503, %v506
    %vm508 = vweird.f32 %v502
    %vm509 = vweird.f32 %v503
    %vm510 = vmor %vm508, %vm509
    %v511 = vsel %vm510, %v503, %v507
    %v512 = vand.u32 2147483647, %v502
    %vm513 = vcmp.eq.f32.partialorder %v512, 8.507059e+37
    %v514 = vand.u32 %v502, 2147483648
    %v515 = vor.u32 1.1754944e-38, %v514
    %v516 = vsel %vm513, %v515, %v511
    %v517 = vmul.f32 1.0, %v516
    %v518 = vadd.f32 %v470, %v178
    %v520 = vrot.slane %v518, 6
    %v522 = vmul.f32 %v494, %v520
    %v523 = vadd.f32 %v128, %v522
    %v524 = vtanh.pop %v523
    %v525 = vsub.f32 1.0, %v517
    %v526 = vmul.f32 %v525, %v524
    %v527 = vrot.slane %v407, 7
    %v529 = vmul.f32 %v517, %v527
    %v530 = vadd.f32 %v526, %v529
    %531 = vst [vmem:[#allocation2] sm:$0x4] %v530
    %v533 = vrot.slane %v530, 2
    %535 = vmatpush.msra.mxu0 %v175
    %536 = vmatpush.msra.mxu0 %v172
    %537 = vmatpush.msra.mxu0 %v169
    %538 = vmatpush.msra.mxu0 %v166
    %539 = vmatpush.msra.mxu0 %v163
    %540 = vmatpush.msra.mxu0 %v160
    %541 = vmatpush.msra.mxu0 %v157
    %542 = vmatpush.msra.mxu0 %v154
    %543 = vmatpush.msra.mxu0 %v151
    %544 = vmatpush.msra.mxu0 %v148
    %545 = vmatpush.msra.mxu0 %v145
    %546 = vmatpush.msra.mxu0 %v142
    %547 = vmatpush.msra.mxu0 %v139
    %548 = vmatpush.msra.mxu0 %v136
    %549 = vmatpush.msra.mxu0 %v133
    %550 = vmatpush.msra.mxu0 %v130
    %551 = vmatmul.f32.gmra.mxu0 %v533
    %v552 = vpop.f32.mrf.mxu0
    %v553 = vadd.f32 0.0, %v552
    %554 = vdwg.mxu0
    %555 = vmatpush.msra.mxu0 %v176
    %556 = vmatpush.msra.mxu0 %v173
    %557 = vmatpush.msra.mxu0 %v170
    %558 = vmatpush.msra.mxu0 %v167
    %559 = vmatpush.msra.mxu0 %v164
    %560 = vmatpush.msra.mxu0 %v161
    %561 = vmatpush.msra.mxu0 %v158
    %562 = vmatpush.msra.mxu0 %v155
    %563 = vmatpush.msra.mxu0 %v152
    %564 = vmatpush.msra.mxu0 %v149
    %565 = vmatpush.msra.mxu0 %v146
    %566 = vmatpush.msra.mxu0 %v143
    %567 = vmatpush.msra.mxu0 %v140
    %568 = vmatpush.msra.mxu0 %v137
    %569 = vmatpush.msra.mxu0 %v134
    %570 = vmatpush.msra.mxu0 %v131
    %571 = vmatmul.f32.gmra.mxu0 %v533
    %v572 = vpop.f32.mrf.mxu0
    %v573 = vadd.f32 0.0, %v572
    %574 = vdwg.mxu0
    %575 = vmatpush.msra.mxu0 %v177
    %576 = vmatpush.msra.mxu0 %v174
    %577 = vmatpush.msra.mxu0 %v171
    %578 = vmatpush.msra.mxu0 %v168
    %579 = vmatpush.msra.mxu0 %v165
    %580 = vmatpush.msra.mxu0 %v162
    %581 = vmatpush.msra.mxu0 %v159
    %582 = vmatpush.msra.mxu0 %v156
    %583 = vmatpush.msra.mxu0 %v153
    %584 = vmatpush.msra.mxu0 %v150
    %585 = vmatpush.msra.mxu0 %v147
    %586 = vmatpush.msra.mxu0 %v144
    %587 = vmatpush.msra.mxu0 %v141
    %588 = vmatpush.msra.mxu0 %v138
    %589 = vmatpush.msra.mxu0 %v135
    %590 = vmatpush.msra.mxu0 %v132
    %591 = vmatmul.f32.gmra.mxu0 %v533
    %v592 = vpop.f32.mrf.mxu0
    %v593 = vadd.f32 0.0, %v592
    %594 = vdwg.mxu0
    %v596 = vrot.slane %v553, 5
    %v598 = vadd.f32 %v88, %v596
    %v599 = vxor.u32 %v598, 2147483648
    %v600 = vmul.f32 %v599, 1.442695
    %v601 = vpow.pop %v600
    %v602 = vadd.f32 %v601, 1.0
    %v603 = vrcp.pop %v602
    %v604 = vmul.f32 %v602, %v603
    %v605 = vsub.f32 1.0, %v604
    %v606 = vmul.f32 %v603, %v605
    %v607 = vadd.f32 %v603, %v606
    %vm608 = vweird.f32 %v602
    %vm609 = vweird.f32 %v603
    %vm610 = vmor %vm608, %vm609
    %v611 = vsel %vm610, %v603, %v607
    %v612 = vand.u32 2147483647, %v602
    %vm613 = vcmp.eq.f32.partialorder %v612, 8.507059e+37
    %v614 = vand.u32 %v602, 2147483648
    %v615 = vor.u32 1.1754944e-38, %v614
    %v616 = vsel %vm613, %v615, %v611
    %v617 = vmul.f32 1.0, %v616
    %v619 = vrot.slane %v573, 5
    %v621 = vadd.f32 %v108, %v619
    %v622 = vxor.u32 %v621, 2147483648
    %v623 = vmul.f32 %v622, 1.442695
    %v624 = vpow.pop %v623
    %v625 = vadd.f32 %v624, 1.0
    %v626 = vrcp.pop %v625
    %v627 = vmul.f32 %v625, %v626
    %v628 = vsub.f32 1.0, %v627
    %v629 = vmul.f32 %v626, %v628
    %v630 = vadd.f32 %v626, %v629
    %vm631 = vweird.f32 %v625
    %vm632 = vweird.f32 %v626
    %vm633 = vmor %vm631, %vm632
    %v634 = vsel %vm633, %v626, %v630
    %v635 = vand.u32 2147483647, %v625
    %vm636 = vcmp.eq.f32.partialorder %v635, 8.507059e+37
    %v637 = vand.u32 %v625, 2147483648
    %v638 = vor.u32 1.1754944e-38, %v637
    %v639 = vsel %vm636, %v638, %v634
    %v640 = vmul.f32 1.0, %v639
    %v641 = vadd.f32 %v593, %v178
    %v643 = vrot.slane %v641, 5
    %v645 = vmul.f32 %v617, %v643
    %v646 = vadd.f32 %v128, %v645
    %v647 = vtanh.pop %v646
    %v648 = vsub.f32 1.0, %v640
    %v649 = vmul.f32 %v648, %v647
    %v650 = vrot.slane %v530, 7
    %v652 = vmul.f32 %v640, %v650
    %v653 = vadd.f32 %v649, %v652
    %654 = vst [vmem:[#allocation2] sm:$0x8] %v653
    %v656 = vrot.slane %v653, 3
    %658 = vmatpush.msra.mxu0 %v175
    %659 = vmatpush.msra.mxu0 %v172
    %660 = vmatpush.msra.mxu0 %v169
    %661 = vmatpush.msra.mxu0 %v166
    %662 = vmatpush.msra.mxu0 %v163
    %663 = vmatpush.msra.mxu0 %v160
    %664 = vmatpush.msra.mxu0 %v157
    %665 = vmatpush.msra.mxu0 %v154
    %666 = vmatpush.msra.mxu0 %v151
    %667 = vmatpush.msra.mxu0 %v148
    %668 = vmatpush.msra.mxu0 %v145
    %669 = vmatpush.msra.mxu0 %v142
    %670 = vmatpush.msra.mxu0 %v139
    %671 = vmatpush.msra.mxu0 %v136
    %672 = vmatpush.msra.mxu0 %v133
    %673 = vmatpush.msra.mxu0 %v130
    %674 = vmatmul.f32.gmra.mxu0 %v656
    %v675 = vpop.f32.mrf.mxu0
    %v676 = vadd.f32 0.0, %v675
    %677 = vdwg.mxu0
    %678 = vmatpush.msra.mxu0 %v176
    %679 = vmatpush.msra.mxu0 %v173
    %680 = vmatpush.msra.mxu0 %v170
    %681 = vmatpush.msra.mxu0 %v167
    %682 = vmatpush.msra.mxu0 %v164
    %683 = vmatpush.msra.mxu0 %v161
    %684 = vmatpush.msra.mxu0 %v158
    %685 = vmatpush.msra.mxu0 %v155
    %686 = vmatpush.msra.mxu0 %v152
    %687 = vmatpush.msra.mxu0 %v149
    %688 = vmatpush.msra.mxu0 %v146
    %689 = vmatpush.msra.mxu0 %v143
    %690 = vmatpush.msra.mxu0 %v140
    %691 = vmatpush.msra.mxu0 %v137
    %692 = vmatpush.msra.mxu0 %v134
    %693 = vmatpush.msra.mxu0 %v131
    %694 = vmatmul.f32.gmra.mxu0 %v656
    %v695 = vpop.f32.mrf.mxu0
    %v696 = vadd.f32 0.0, %v695
    %697 = vdwg.mxu0
    %698 = vmatpush.msra.mxu0 %v177
    %699 = vmatpush.msra.mxu0 %v174
    %700 = vmatpush.msra.mxu0 %v171
    %701 = vmatpush.msra.mxu0 %v168
    %702 = vmatpush.msra.mxu0 %v165
    %703 = vmatpush.msra.mxu0 %v162
    %704 = vmatpush.msra.mxu0 %v159
    %705 = vmatpush.msra.mxu0 %v156
    %706 = vmatpush.msra.mxu0 %v153
    %707 = vmatpush.msra.mxu0 %v150
    %708 = vmatpush.msra.mxu0 %v147
    %709 = vmatpush.msra.mxu0 %v144
    %710 = vmatpush.msra.mxu0 %v141
    %711 = vmatpush.msra.mxu0 %v138
    %712 = vmatpush.msra.mxu0 %v135
    %713 = vmatpush.msra.mxu0 %v132
    %714 = vmatmul.f32.gmra.mxu0 %v656
    %v715 = vpop.f32.mrf.mxu0
    %v716 = vadd.f32 0.0, %v715
    %717 = vdwg.mxu0
    %v719 = vrot.slane %v676, 4
    %v721 = vadd.f32 %v88, %v719
    %v722 = vxor.u32 %v721, 2147483648
    %v723 = vmul.f32 %v722, 1.442695
    %v724 = vpow.pop %v723
    %v725 = vadd.f32 %v724, 1.0
    %v726 = vrcp.pop %v725
    %v727 = vmul.f32 %v725, %v726
    %v728 = vsub.f32 1.0, %v727
    %v729 = vmul.f32 %v726, %v728
    %v730 = vadd.f32 %v726, %v729
    %vm731 = vweird.f32 %v725
    %vm732 = vweird.f32 %v726
    %vm733 = vmor %vm731, %vm732
    %v734 = vsel %vm733, %v726, %v730
    %v735 = vand.u32 2147483647, %v725
    %vm736 = vcmp.eq.f32.partialorder %v735, 8.507059e+37
    %v737 = vand.u32 %v725, 2147483648
    %v738 = vor.u32 1.1754944e-38, %v737
    %v739 = vsel %vm736, %v738, %v734
    %v740 = vmul.f32 1.0, %v739
    %v742 = vrot.slane %v696, 4
    %v744 = vadd.f32 %v108, %v742
    %v745 = vxor.u32 %v744, 2147483648
    %v746 = vmul.f32 %v745, 1.442695
    %v747 = vpow.pop %v746
    %v748 = vadd.f32 %v747, 1.0
    %v749 = vrcp.pop %v748
    %v750 = vmul.f32 %v748, %v749
    %v751 = vsub.f32 1.0, %v750
    %v752 = vmul.f32 %v749, %v751
    %v753 = vadd.f32 %v749, %v752
    %vm754 = vweird.f32 %v748
    %vm755 = vweird.f32 %v749
    %vm756 = vmor %vm754, %vm755
    %v757 = vsel %vm756, %v749, %v753
    %v758 = vand.u32 2147483647, %v748
    %vm759 = vcmp.eq.f32.partialorder %v758, 8.507059e+37
    %v760 = vand.u32 %v748, 2147483648
    %v761 = vor.u32 1.1754944e-38, %v760
    %v762 = vsel %vm759, %v761, %v757
    %v763 = vmul.f32 1.0, %v762
    %v764 = vadd.f32 %v716, %v178
    %v766 = vrot.slane %v764, 4
    %v768 = vmul.f32 %v740, %v766
    %v769 = vadd.f32 %v128, %v768
    %v770 = vtanh.pop %v769
    %v771 = vsub.f32 1.0, %v763
    %v772 = vmul.f32 %v771, %v770
    %v773 = vrot.slane %v653, 7
    %v775 = vmul.f32 %v763, %v773
    %v776 = vadd.f32 %v772, %v775
    %777 = vst [vmem:[#allocation2] sm:$0x10] %v776
    %v779 = vrot.slane %v776, 4
    %781 = vmatpush.msra.mxu0 %v175
    %782 = vmatpush.msra.mxu0 %v172
    %783 = vmatpush.msra.mxu0 %v169
    %784 = vmatpush.msra.mxu0 %v166
    %785 = vmatpush.msra.mxu0 %v163
    %786 = vmatpush.msra.mxu0 %v160
    %787 = vmatpush.msra.mxu0 %v157
    %788 = vmatpush.msra.mxu0 %v154
    %789 = vmatpush.msra.mxu0 %v151
    %790 = vmatpush.msra.mxu0 %v148
    %791 = vmatpush.msra.mxu0 %v145
    %792 = vmatpush.msra.mxu0 %v142
    %793 = vmatpush.msra.mxu0 %v139
    %794 = vmatpush.msra.mxu0 %v136
    %795 = vmatpush.msra.mxu0 %v133
    %796 = vmatpush.msra.mxu0 %v130
    %797 = vmatmul.f32.gmra.mxu0 %v779
    %v798 = vpop.f32.mrf.mxu0
    %v799 = vadd.f32 0.0, %v798
    %800 = vdwg.mxu0
    %801 = vmatpush.msra.mxu0 %v176
    %802 = vmatpush.msra.mxu0 %v173
    %803 = vmatpush.msra.mxu0 %v170
    %804 = vmatpush.msra.mxu0 %v167
    %805 = vmatpush.msra.mxu0 %v164
    %806 = vmatpush.msra.mxu0 %v161
    %807 = vmatpush.msra.mxu0 %v158
    %808 = vmatpush.msra.mxu0 %v155
    %809 = vmatpush.msra.mxu0 %v152
    %810 = vmatpush.msra.mxu0 %v149
    %811 = vmatpush.msra.mxu0 %v146
    %812 = vmatpush.msra.mxu0 %v143
    %813 = vmatpush.msra.mxu0 %v140
    %814 = vmatpush.msra.mxu0 %v137
    %815 = vmatpush.msra.mxu0 %v134
    %816 = vmatpush.msra.mxu0 %v131
    %817 = vmatmul.f32.gmra.mxu0 %v779
    %v818 = vpop.f32.mrf.mxu0
    %v819 = vadd.f32 0.0, %v818
    %820 = vdwg.mxu0
    %821 = vmatpush.msra.mxu0 %v177
    %822 = vmatpush.msra.mxu0 %v174
    %823 = vmatpush.msra.mxu0 %v171
    %824 = vmatpush.msra.mxu0 %v168
    %825 = vmatpush.msra.mxu0 %v165
    %826 = vmatpush.msra.mxu0 %v162
    %827 = vmatpush.msra.mxu0 %v159
    %828 = vmatpush.msra.mxu0 %v156
    %829 = vmatpush.msra.mxu0 %v153
    %830 = vmatpush.msra.mxu0 %v150
    %831 = vmatpush.msra.mxu0 %v147
    %832 = vmatpush.msra.mxu0 %v144
    %833 = vmatpush.msra.mxu0 %v141
    %834 = vmatpush.msra.mxu0 %v138
    %835 = vmatpush.msra.mxu0 %v135
    %836 = vmatpush.msra.mxu0 %v132
    %837 = vmatmul.f32.gmra.mxu0 %v779
    %v838 = vpop.f32.mrf.mxu0
    %v839 = vadd.f32 0.0, %v838
    %840 = vdwg.mxu0
    %v842 = vrot.slane %v799, 3
    %v844 = vadd.f32 %v88, %v842
    %v845 = vxor.u32 %v844, 2147483648
    %v846 = vmul.f32 %v845, 1.442695
    %v847 = vpow.pop %v846
    %v848 = vadd.f32 %v847, 1.0
    %v849 = vrcp.pop %v848
    %v850 = vmul.f32 %v848, %v849
    %v851 = vsub.f32 1.0, %v850
    %v852 = vmul.f32 %v849, %v851
    %v853 = vadd.f32 %v849, %v852
    %vm854 = vweird.f32 %v848
    %vm855 = vweird.f32 %v849
    %vm856 = vmor %vm854, %vm855
    %v857 = vsel %vm856, %v849, %v853
    %v858 = vand.u32 2147483647, %v848
    %vm859 = vcmp.eq.f32.partialorder %v858, 8.507059e+37
    %v860 = vand.u32 %v848, 2147483648
    %v861 = vor.u32 1.1754944e-38, %v860
    %v862 = vsel %vm859, %v861, %v857
    %v863 = vmul.f32 1.0, %v862
    %v865 = vrot.slane %v819, 3
    %v867 = vadd.f32 %v108, %v865
    %v868 = vxor.u32 %v867, 2147483648
    %v869 = vmul.f32 %v868, 1.442695
    %v870 = vpow.pop %v869
    %v871 = vadd.f32 %v870, 1.0
    %v872 = vrcp.pop %v871
    %v873 = vmul.f32 %v871, %v872
    %v874 = vsub.f32 1.0, %v873
    %v875 = vmul.f32 %v872, %v874
    %v876 = vadd.f32 %v872, %v875
    %vm877 = vweird.f32 %v871
    %vm878 = vweird.f32 %v872
    %vm879 = vmor %vm877, %vm878
    %v880 = vsel %vm879, %v872, %v876
    %v881 = vand.u32 2147483647, %v871
    %vm882 = vcmp.eq.f32.partialorder %v881, 8.507059e+37
    %v883 = vand.u32 %v871, 2147483648
    %v884 = vor.u32 1.1754944e-38, %v883
    %v885 = vsel %vm882, %v884, %v880
    %v886 = vmul.f32 1.0, %v885
    %v887 = vadd.f32 %v839, %v178
    %v889 = vrot.slane %v887, 3
    %v891 = vmul.f32 %v863, %v889
    %v892 = vadd.f32 %v128, %v891
    %v893 = vtanh.pop %v892
    %v894 = vsub.f32 1.0, %v886
    %v895 = vmul.f32 %v894, %v893
    %v896 = vrot.slane %v776, 7
    %v898 = vmul.f32 %v886, %v896
    %v899 = vadd.f32 %v895, %v898
    %900 = vst [vmem:[#allocation2] sm:$0x20] %v899
    %v902 = vrot.slane %v899, 5
    %904 = vmatpush.msra.mxu0 %v175
    %905 = vmatpush.msra.mxu0 %v172
    %906 = vmatpush.msra.mxu0 %v169
    %907 = vmatpush.msra.mxu0 %v166
    %908 = vmatpush.msra.mxu0 %v163
    %909 = vmatpush.msra.mxu0 %v160
    %910 = vmatpush.msra.mxu0 %v157
    %911 = vmatpush.msra.mxu0 %v154
    %912 = vmatpush.msra.mxu0 %v151
    %913 = vmatpush.msra.mxu0 %v148
    %914 = vmatpush.msra.mxu0 %v145
    %915 = vmatpush.msra.mxu0 %v142
    %916 = vmatpush.msra.mxu0 %v139
    %917 = vmatpush.msra.mxu0 %v136
    %918 = vmatpush.msra.mxu0 %v133
    %919 = vmatpush.msra.mxu0 %v130
    %920 = vmatmul.f32.gmra.mxu0 %v902
    %v921 = vpop.f32.mrf.mxu0
    %v922 = vadd.f32 0.0, %v921
    %923 = vdwg.mxu0
    %924 = vmatpush.msra.mxu0 %v176
    %925 = vmatpush.msra.mxu0 %v173
    %926 = vmatpush.msra.mxu0 %v170
    %927 = vmatpush.msra.mxu0 %v167
    %928 = vmatpush.msra.mxu0 %v164
    %929 = vmatpush.msra.mxu0 %v161
    %930 = vmatpush.msra.mxu0 %v158
    %931 = vmatpush.msra.mxu0 %v155
    %932 = vmatpush.msra.mxu0 %v152
    %933 = vmatpush.msra.mxu0 %v149
    %934 = vmatpush.msra.mxu0 %v146
    %935 = vmatpush.msra.mxu0 %v143
    %936 = vmatpush.msra.mxu0 %v140
    %937 = vmatpush.msra.mxu0 %v137
    %938 = vmatpush.msra.mxu0 %v134
    %939 = vmatpush.msra.mxu0 %v131
    %940 = vmatmul.f32.gmra.mxu0 %v902
    %v941 = vpop.f32.mrf.mxu0
    %v942 = vadd.f32 0.0, %v941
    %943 = vdwg.mxu0
    %944 = vmatpush.msra.mxu0 %v177
    %945 = vmatpush.msra.mxu0 %v174
    %946 = vmatpush.msra.mxu0 %v171
    %947 = vmatpush.msra.mxu0 %v168
    %948 = vmatpush.msra.mxu0 %v165
    %949 = vmatpush.msra.mxu0 %v162
    %950 = vmatpush.msra.mxu0 %v159
    %951 = vmatpush.msra.mxu0 %v156
    %952 = vmatpush.msra.mxu0 %v153
    %953 = vmatpush.msra.mxu0 %v150
    %954 = vmatpush.msra.mxu0 %v147
    %955 = vmatpush.msra.mxu0 %v144
    %956 = vmatpush.msra.mxu0 %v141
    %957 = vmatpush.msra.mxu0 %v138
    %958 = vmatpush.msra.mxu0 %v135
    %959 = vmatpush.msra.mxu0 %v132
    %960 = vmatmul.f32.gmra.mxu0 %v902
    %v961 = vpop.f32.mrf.mxu0
    %v962 = vadd.f32 0.0, %v961
    %963 = vdwg.mxu0
    %v965 = vrot.slane %v922, 2
    %v967 = vadd.f32 %v88, %v965
    %v968 = vxor.u32 %v967, 2147483648
    %v969 = vmul.f32 %v968, 1.442695
    %v970 = vpow.pop %v969
    %v971 = vadd.f32 %v970, 1.0
    %v972 = vrcp.pop %v971
    %v973 = vmul.f32 %v971, %v972
    %v974 = vsub.f32 1.0, %v973
    %v975 = vmul.f32 %v972, %v974
    %v976 = vadd.f32 %v972, %v975
    %vm977 = vweird.f32 %v971
    %vm978 = vweird.f32 %v972
    %vm979 = vmor %vm977, %vm978
    %v980 = vsel %vm979, %v972, %v976
    %v981 = vand.u32 2147483647, %v971
    %vm982 = vcmp.eq.f32.partialorder %v981, 8.507059e+37
    %v983 = vand.u32 %v971, 2147483648
    %v984 = vor.u32 1.1754944e-38, %v983
    %v985 = vsel %vm982, %v984, %v980
    %v986 = vmul.f32 1.0, %v985
    %v988 = vrot.slane %v942, 2
    %v990 = vadd.f32 %v108, %v988
    %v991 = vxor.u32 %v990, 2147483648
    %v992 = vmul.f32 %v991, 1.442695
    %v993 = vpow.pop %v992
    %v994 = vadd.f32 %v993, 1.0
    %v995 = vrcp.pop %v994
    %v996 = vmul.f32 %v994, %v995
    %v997 = vsub.f32 1.0, %v996
    %v998 = vmul.f32 %v995, %v997
    %v999 = vadd.f32 %v995, %v998
    %vm1000 = vweird.f32 %v994
    %vm1001 = vweird.f32 %v995
    %vm1002 = vmor %vm1000, %vm1001
    %v1003 = vsel %vm1002, %v995, %v999
    %v1004 = vand.u32 2147483647, %v994
    %vm1005 = vcmp.eq.f32.partialorder %v1004, 8.507059e+37
    %v1006 = vand.u32 %v994, 2147483648
    %v1007 = vor.u32 1.1754944e-38, %v1006
    %v1008 = vsel %vm1005, %v1007, %v1003
    %v1009 = vmul.f32 1.0, %v1008
    %v1010 = vadd.f32 %v962, %v178
    %v1012 = vrot.slane %v1010, 2
    %v1014 = vmul.f32 %v986, %v1012
    %v1015 = vadd.f32 %v128, %v1014
    %v1016 = vtanh.pop %v1015
    %v1017 = vsub.f32 1.0, %v1009
    %v1018 = vmul.f32 %v1017, %v1016
    %v1019 = vrot.slane %v899, 7
    %v1021 = vmul.f32 %v1009, %v1019
    %v1022 = vadd.f32 %v1018, %v1021
    %1023 = vst [vmem:[#allocation2] sm:$0x40] %v1022
    %v1025 = vrot.slane %v1022, 6
    %1027 = vmatpush.msra.mxu0 %v175
    %1028 = vmatpush.msra.mxu0 %v172
    %1029 = vmatpush.msra.mxu0 %v169
    %1030 = vmatpush.msra.mxu0 %v166
    %1031 = vmatpush.msra.mxu0 %v163
    %1032 = vmatpush.msra.mxu0 %v160
    %1033 = vmatpush.msra.mxu0 %v157
    %1034 = vmatpush.msra.mxu0 %v154
    %1035 = vmatpush.msra.mxu0 %v151
    %1036 = vmatpush.msra.mxu0 %v148
    %1037 = vmatpush.msra.mxu0 %v145
    %1038 = vmatpush.msra.mxu0 %v142
    %1039 = vmatpush.msra.mxu0 %v139
    %1040 = vmatpush.msra.mxu0 %v136
    %1041 = vmatpush.msra.mxu0 %v133
    %1042 = vmatpush.msra.mxu0 %v130
    %1043 = vmatmul.f32.gmra.mxu0 %v1025
    %v1044 = vpop.f32.mrf.mxu0
    %v1045 = vadd.f32 0.0, %v1044
    %1046 = vdwg.mxu0
    %1047 = vmatpush.msra.mxu0 %v176
    %1048 = vmatpush.msra.mxu0 %v173
    %1049 = vmatpush.msra.mxu0 %v170
    %1050 = vmatpush.msra.mxu0 %v167
    %1051 = vmatpush.msra.mxu0 %v164
    %1052 = vmatpush.msra.mxu0 %v161
    %1053 = vmatpush.msra.mxu0 %v158
    %1054 = vmatpush.msra.mxu0 %v155
    %1055 = vmatpush.msra.mxu0 %v152
    %1056 = vmatpush.msra.mxu0 %v149
    %1057 = vmatpush.msra.mxu0 %v146
    %1058 = vmatpush.msra.mxu0 %v143
    %1059 = vmatpush.msra.mxu0 %v140
    %1060 = vmatpush.msra.mxu0 %v137
    %1061 = vmatpush.msra.mxu0 %v134
    %1062 = vmatpush.msra.mxu0 %v131
    %1063 = vmatmul.f32.gmra.mxu0 %v1025
    %v1064 = vpop.f32.mrf.mxu0
    %v1065 = vadd.f32 0.0, %v1064
    %1066 = vdwg.mxu0
    %1067 = vmatpush.msra.mxu0 %v177
    %1068 = vmatpush.msra.mxu0 %v174
    %1069 = vmatpush.msra.mxu0 %v171
    %1070 = vmatpush.msra.mxu0 %v168
    %1071 = vmatpush.msra.mxu0 %v165
    %1072 = vmatpush.msra.mxu0 %v162
    %1073 = vmatpush.msra.mxu0 %v159
    %1074 = vmatpush.msra.mxu0 %v156
    %1075 = vmatpush.msra.mxu0 %v153
    %1076 = vmatpush.msra.mxu0 %v150
    %1077 = vmatpush.msra.mxu0 %v147
    %1078 = vmatpush.msra.mxu0 %v144
    %1079 = vmatpush.msra.mxu0 %v141
    %1080 = vmatpush.msra.mxu0 %v138
    %1081 = vmatpush.msra.mxu0 %v135
    %1082 = vmatpush.msra.mxu0 %v132
    %1083 = vmatmul.f32.gmra.mxu0 %v1025
    %v1084 = vpop.f32.mrf.mxu0
    %v1085 = vadd.f32 0.0, %v1084
    %1086 = vdwg.mxu0
    %v1088 = vrot.slane %v1045, 1
    %v1090 = vadd.f32 %v88, %v1088
    %v1091 = vxor.u32 %v1090, 2147483648
    %v1092 = vmul.f32 %v1091, 1.442695
    %v1093 = vpow.pop %v1092
    %v1094 = vadd.f32 %v1093, 1.0
    %v1095 = vrcp.pop %v1094
    %v1096 = vmul.f32 %v1094, %v1095
    %v1097 = vsub.f32 1.0, %v1096
    %v1098 = vmul.f32 %v1095, %v1097
    %v1099 = vadd.f32 %v1095, %v1098
    %vm1100 = vweird.f32 %v1094
    %vm1101 = vweird.f32 %v1095
    %vm1102 = vmor %vm1100, %vm1101
    %v1103 = vsel %vm1102, %v1095, %v1099
    %v1104 = vand.u32 2147483647, %v1094
    %vm1105 = vcmp.eq.f32.partialorder %v1104, 8.507059e+37
    %v1106 = vand.u32 %v1094, 2147483648
    %v1107 = vor.u32 1.1754944e-38, %v1106
    %v1108 = vsel %vm1105, %v1107, %v1103
    %v1109 = vmul.f32 1.0, %v1108
    %v1111 = vrot.slane %v1065, 1
    %v1113 = vadd.f32 %v108, %v1111
    %v1114 = vxor.u32 %v1113, 2147483648
    %v1115 = vmul.f32 %v1114, 1.442695
    %v1116 = vpow.pop %v1115
    %v1117 = vadd.f32 %v1116, 1.0
    %v1118 = vrcp.pop %v1117
    %v1119 = vmul.f32 %v1117, %v1118
    %v1120 = vsub.f32 1.0, %v1119
    %v1121 = vmul.f32 %v1118, %v1120
    %v1122 = vadd.f32 %v1118, %v1121
    %vm1123 = vweird.f32 %v1117
    %vm1124 = vweird.f32 %v1118
    %vm1125 = vmor %vm1123, %vm1124
    %v1126 = vsel %vm1125, %v1118, %v1122
    %v1127 = vand.u32 2147483647, %v1117
    %vm1128 = vcmp.eq.f32.partialorder %v1127, 8.507059e+37
    %v1129 = vand.u32 %v1117, 2147483648
    %v1130 = vor.u32 1.1754944e-38, %v1129
    %v1131 = vsel %vm1128, %v1130, %v1126
    %v1132 = vmul.f32 1.0, %v1131
    %v1133 = vadd.f32 %v1085, %v178
    %v1135 = vrot.slane %v1133, 1
    %v1137 = vmul.f32 %v1109, %v1135
    %v1138 = vadd.f32 %v128, %v1137
    %v1139 = vtanh.pop %v1138
    %v1140 = vsub.f32 1.0, %v1132
    %v1141 = vmul.f32 %v1140, %v1139
    %v1142 = vrot.slane %v1022, 7
    %v1144 = vmul.f32 %v1132, %v1142
    %v1145 = vadd.f32 %v1141, %v1144
    %1146 = vst [vmem:[#allocation2] sm:$0x80] %v1145
    %v1147 = vld [vmem:[#allocation2] sm:$0xff]
    %v1148 = vld [vmem:[%s5] sm:$0xff]
    %v1149 = vld [vmem:[%s5 + $0x8] sm:$0xff]
    %v1150 = vld [vmem:[%s5 + $0x10] sm:$0xff]
    %v1151 = vld [vmem:[%s5 + $0x18] sm:$0xff]
    %v1152 = vld [vmem:[%s5 + $0x20] sm:$0xff]
    %v1153 = vld [vmem:[%s5 + $0x28] sm:$0xff]
    %v1154 = vld [vmem:[%s5 + $0x30] sm:$0xff]
    %v1155 = vld [vmem:[%s5 + $0x38] sm:$0xff]
    %v1156 = vld [vmem:[%s5 + $0x40] sm:$0xff]
    %v1157 = vld [vmem:[%s5 + $0x48] sm:$0xff]
    %v1158 = vld [vmem:[%s5 + $0x50] sm:$0xff]
    %v1159 = vld [vmem:[%s5 + $0x58] sm:$0xff]
    %v1160 = vld [vmem:[%s5 + $0x60] sm:$0xff]
    %v1161 = vld [vmem:[%s5 + $0x68] sm:$0xff]
    %v1162 = vld [vmem:[%s5 + $0x70] sm:$0xff]
    %v1163 = vld [vmem:[%s5 + $0x78] sm:$0xff]
    %v1164 = vld [vmem:[#allocation3] sm:$0x1]
    %v1166 = vperm.slane %v1164, 0
    %1168 = vmatpush.msra.mxu0 %v1163
    %1169 = vmatpush.msra.mxu0 %v1162
    %1170 = vmatpush.msra.mxu0 %v1161
    %1171 = vmatpush.msra.mxu0 %v1160
    %1172 = vmatpush.msra.mxu0 %v1159
    %1173 = vmatpush.msra.mxu0 %v1158
    %1174 = vmatpush.msra.mxu0 %v1157
    %1175 = vmatpush.msra.mxu0 %v1156
    %1176 = vmatpush.msra.mxu0 %v1155
    %1177 = vmatpush.msra.mxu0 %v1154
    %1178 = vmatpush.msra.mxu0 %v1153
    %1179 = vmatpush.msra.mxu0 %v1152
    %1180 = vmatpush.msra.mxu0 %v1151
    %1181 = vmatpush.msra.mxu0 %v1150
    %1182 = vmatpush.msra.mxu0 %v1149
    %1183 = vmatpush.msra.mxu0 %v1148
    %1184 = vmatmul.f32.gmra.mxu0 %v1147
    %v1185 = vpop.f32.mrf.mxu0
    %v1186 = vadd.f32 %v1166, %v1185
    %1187 = vdwg.mxu0
    %vm1188 = vcmask 7168
    %1189 = vst.msk [vmem:[%s7] sm:$0xff] %vm1188, %v1186
    // Predicated region
    $region34: #{gru_stock_forward.1} parent=1 // pred_check
      _
    $region35: #{gru_stock_forward.1} parent=1 // pred_check_branch
      %1191 = sbr.rel (0) target = $region37
    $region36: #{gru_stock_forward.1} parent=1 // pred_region
      _
    $region37: #{gru_stock_forward.1} parent=1 // pred_fallthru
      _
    // Predicated region
    $region38: #{gru_stock_forward.1} parent=1 // pred_check
      _
    $region39: #{gru_stock_forward.1} parent=1 // pred_check_branch
      %1193 = sbr.rel (0) target = $region41
    $region40: #{gru_stock_forward.1} parent=1 // pred_region
      _
    $region41: #{gru_stock_forward.1} parent=1 // pred_fallthru
      _
    %1194 = vsyncpa [#allocation5], 1

</llo_original>
